<compile_context>
chip_gen: v5e
topology: v5e:2x2
jax: 0.10.0
libtpu: 0.0.40
codegen_flags: <defaults>
</compile_context>

<pallas_src>
import jax
import jax.numpy as jnp
from jax import lax
from jax.experimental import pallas as pl
from jax.experimental.pallas import tpu as pltpu

# ---------------- configuration (small, consistent with the module) ----------------
B = 2                    # batch
N = 8                    # tokens per sample
C = 32                   # embedding dim
H = 4                    # heads
DH = C // H              # head dim
BN = B * N               # 16 tokens total (batch folded)
HB = H * B               # head-batched attention batch (s = h*B + b)
MLP_HIDDEN = int(C * 4.0)
LN_EPS = 1e-5
SCALE = DH ** (-0.5)

# ------------- single packed weight tensor: (NPLANES, WROWS, 128) f32 -------------
WROWS = 40               # C weight rows + 1 bias row, padded to a multiple of 8
WLANES = 128
PLANE_W1 = H             # fc1 weight (C, MLP_HIDDEN) + fc1 bias row
PLANE_W2 = H + 1         # fc2 weight in torch layout (C, MLP_HIDDEN) + fc2 bias row
PLANE_VEC = H + 2        # LN gammas/betas + proj bias
NPLANES = H + 3
ROW_BIAS = C             # bias row inside a weight plane
ROW_LN1_G, ROW_LN1_B, ROW_LN2_G, ROW_LN2_B, ROW_PROJ_B = 0, 1, 2, 3, 4
# head planes 0..H-1, rows 0..C-1:
#   lanes [0:DH)      = Wq_h^T * SCALE
#   lanes [DH:2DH)    = Wk_h^T
#   lanes [2DH:3DH)   = Wv_h^T
#   lanes [3DH:4DH)   = (per-head Wproj^T slice)^T, i.e. (C, DH)
# row ROW_BIAS, lanes [0:3DH) = [q_bias_h*SCALE | 0 (k bias) | v_bias_h]


def _gelu_exact(x):
    # PyTorch nn.GELU default = exact erf formulation
    return 0.5 * x * (1.0 + lax.erf(x / jnp.sqrt(2.0).astype(x.dtype)))


def _layernorm(x, g, b):
    mu = jnp.mean(x, axis=-1, keepdims=True)
    var = jnp.mean((x - mu) ** 2, axis=-1, keepdims=True)
    return (x - mu) * lax.rsqrt(var + LN_EPS) * g + b


def block_kernel(x_ref, w_ref, o_ref):
    f32 = jnp.float32
    x = x_ref[...].astype(f32)                                   # (BN, C)

    # ---------------- unpack the single weight slab (static slices) ----------------
    vecs = w_ref[PLANE_VEC, 0:8, 0:C]                            # (8, C)
    ln1_g = vecs[ROW_LN1_G:ROW_LN1_G + 1, :]
    ln1_b = vecs[ROW_LN1_B:ROW_LN1_B + 1, :]
    ln2_g = vecs[ROW_LN2_G:ROW_LN2_G + 1, :]
    ln2_b = vecs[ROW_LN2_B:ROW_LN2_B + 1, :]
    proj_b = vecs[ROW_PROJ_B:ROW_PROJ_B + 1, :]

    # ---------------- norm1 ----------------
    xn = _layernorm(x, ln1_g, ln1_b)                             # (BN, C)

    # ---------------- attention (head-batched einsums) ----------------
    wh = w_ref[0:H, 0:C, 0:4 * DH]                               # (H, C, 4*DH)
    bh = w_ref[0:H, ROW_BIAS:ROW_BIAS + 1, 0:3 * DH]             # (H, 1, 3*DH)

    # batch axis s = h*B + b, built only with leading-dim broadcasts/reshapes
    xn_s = jnp.broadcast_to(xn.reshape(B, N, C)[None], (H, B, N, C)).reshape(HB, N, C)
    wh_s = jnp.broadcast_to(wh[:, None], (H, B, C, 4 * DH)).reshape(HB, C, 4 * DH)
    bh_s = jnp.broadcast_to(bh[:, None], (H, B, 1, 3 * DH)).reshape(HB, 1, 3 * DH)

    qkv = jnp.einsum('snc,scd->snd', xn_s, wh_s[:, :, 0:3 * DH],
                     preferred_element_type=f32) + bh_s          # (HB, N, 3*DH)
    q = qkv[:, :, 0:DH]                  # SCALE already folded into weights/bias
    k = qkv[:, :, DH:2 * DH]
    v = qkv[:, :, 2 * DH:3 * DH]

    s = jnp.einsum('sqd,skd->sqk', q, k, preferred_element_type=f32)   # (HB, N, N)
    s = s - jnp.max(s, axis=-1, keepdims=True)
    e = jnp.exp(s)
    p = e / jnp.sum(e, axis=-1, keepdims=True)                   # exact divide

    o_h = jnp.einsum('sqk,skd->sqd', p, v, preferred_element_type=f32)  # (HB, N, DH)

    # per-head output projection (weights stored pre-transposed as (C, DH)),
    # folded back over heads with a leading-dim reshape + sum (no transposes).
    proj_h = jnp.einsum('snd,scd->snc', o_h, wh_s[:, :, 3 * DH:4 * DH],
                        preferred_element_type=f32)              # (HB, N, C)
    attn = jnp.sum(proj_h.reshape(H, B, N, C), axis=0).reshape(BN, C) + proj_b
    x = x + attn                                                 # residual 1

    # ---------------- norm2 + mlp ----------------
    xn2 = _layernorm(x, ln2_g, ln2_b)

    w1 = w_ref[PLANE_W1, 0:C, :]                                 # (C, MLP_HIDDEN)
    fc1_b = w_ref[PLANE_W1, ROW_BIAS:ROW_BIAS + 1, :]            # (1, MLP_HIDDEN)
    hdn = _gelu_exact(jnp.dot(xn2, w1, preferred_element_type=f32) + fc1_b)

    w2 = w_ref[PLANE_W2, 0:C, :]                                 # (C, MLP_HIDDEN) torch layout
    fc2_b = w_ref[PLANE_W2, ROW_BIAS:ROW_BIAS + 1, 0:C]          # (1, C)
    mlp = lax.dot_general(hdn, w2, (((1,), (1,)), ((), ())),
                          preferred_element_type=f32) + fc2_b

    o_ref[...] = (x + mlp).astype(o_ref.dtype)                   # residual 2


def block_forward(x, params):
    """x: (B, N, C) float32. params: dict from init_params (packed weights)."""
    x2d = x.reshape(BN, C)   # fold batch: one kernel invocation over all tokens
    out = pl.pallas_call(
        block_kernel,
        out_shape=jax.ShapeDtypeStruct((BN, C), x.dtype),
        in_specs=[pl.BlockSpec(memory_space=pltpu.MemorySpace.VMEM),
                  pl.BlockSpec(memory_space=pltpu.MemorySpace.VMEM)],
        out_specs=pl.BlockSpec(memory_space=pltpu.MemorySpace.VMEM),
    )(x2d, params["pack"])
    return out.reshape(B, N, C)


def init_params(key):
    ks = jax.random.split(key, 8)
    f32 = jnp.float32
    # torch nn.Linear weights are (out, in)
    wqkv_torch = 0.02 * jax.random.normal(ks[0], (3 * C, C), f32)
    q_bias = 0.01 * jax.random.normal(ks[1], (C,), f32)
    v_bias = 0.01 * jax.random.normal(ks[2], (C,), f32)
    wproj_torch = 0.02 * jax.random.normal(ks[3], (C, C), f32)
    bproj = 0.01 * jax.random.normal(ks[4], (C,), f32)
    w1_torch = 0.02 * jax.random.normal(ks[5], (MLP_HIDDEN, C), f32)
    b1 = 0.01 * jax.random.normal(ks[6], (MLP_HIDDEN,), f32)
    w2_torch = 0.02 * jax.random.normal(ks[7], (C, MLP_HIDDEN), f32)
    b2 = jnp.zeros((C,), f32)
    ln1_g = jnp.ones((C,), f32) * 1.1
    ln1_b = jnp.ones((C,), f32) * 0.05
    ln2_g = jnp.ones((C,), f32) * 0.9
    ln2_b = jnp.ones((C,), f32) * -0.05

    # (in, out) layouts
    wq_t = wqkv_torch[0 * C:1 * C].T
    wk_t = wqkv_torch[1 * C:2 * C].T
    wv_t = wqkv_torch[2 * C:3 * C].T
    wproj_t = wproj_torch.T

    # -------- single packed weight tensor --------
    pack = jnp.zeros((NPLANES, WROWS, WLANES), f32)
    for h in range(H):
        sl = slice(h * DH, (h + 1) * DH)
        pack = pack.at[h, 0:C, 0:DH].set(wq_t[:, sl] * SCALE)        # SCALE folded
        pack = pack.at[h, 0:C, DH:2 * DH].set(wk_t[:, sl])
        pack = pack.at[h, 0:C, 2 * DH:3 * DH].set(wv_t[:, sl])
        pack = pack.at[h, 0:C, 3 * DH:4 * DH].set(wproj_t[sl, :].T)  # (C, DH)
        pack = pack.at[h, ROW_BIAS, 0:DH].set(q_bias[sl] * SCALE)
        # k bias stays zero (torch: cat(q_bias, zeros_like(v_bias), v_bias))
        pack = pack.at[h, ROW_BIAS, 2 * DH:3 * DH].set(v_bias[sl])
    pack = pack.at[PLANE_W1, 0:C, :].set(w1_torch.T)                 # (C, MLP_HIDDEN)
    pack = pack.at[PLANE_W1, ROW_BIAS, :].set(b1)
    pack = pack.at[PLANE_W2, 0:C, :].set(w2_torch)                   # torch layout
    pack = pack.at[PLANE_W2, ROW_BIAS, 0:C].set(b2)
    pack = pack.at[PLANE_VEC, ROW_LN1_G, 0:C].set(ln1_g)
    pack = pack.at[PLANE_VEC, ROW_LN1_B, 0:C].set(ln1_b)
    pack = pack.at[PLANE_VEC, ROW_LN2_G, 0:C].set(ln2_g)
    pack = pack.at[PLANE_VEC, ROW_LN2_B, 0:C].set(ln2_b)
    pack = pack.at[PLANE_VEC, ROW_PROJ_B, 0:C].set(bproj)

    return {
        "pack": pack,
        # raw parameters kept only for the pure-JAX reference
        "wq_t": wq_t, "wk_t": wk_t, "wv_t": wv_t, "q_bias": q_bias, "v_bias": v_bias,
        "wproj_t": wproj_t, "bproj": bproj,
        "w1_t": w1_torch.T, "b1": b1, "w2_t": w2_torch.T, "b2": b2,
        "ln1_g": ln1_g, "ln1_b": ln1_b, "ln2_g": ln2_g, "ln2_b": ln2_b,
    }


def block_reference(x, p):
    """Pure-JAX reference mirroring the PyTorch forward (eval mode)."""
    def ln(v, g, b):
        mu = jnp.mean(v, axis=-1, keepdims=True)
        var = jnp.mean((v - mu) ** 2, axis=-1, keepdims=True)
        return (v - mu) / jnp.sqrt(var + LN_EPS) * g + b

    xn = ln(x, p["ln1_g"], p["ln1_b"])                            # (B, N, C)
    q = (xn @ p["wq_t"] + p["q_bias"]) * SCALE
    k = xn @ p["wk_t"]
    v = xn @ p["wv_t"] + p["v_bias"]

    def heads(t):
        return t.reshape(B, N, H, DH).transpose(0, 2, 1, 3)       # (B, H, N, DH)

    attn = jax.nn.softmax(heads(q) @ jnp.swapaxes(heads(k), -1, -2), axis=-1)
    o = (attn @ heads(v)).transpose(0, 2, 1, 3).reshape(B, N, C)
    x = x + (o @ p["wproj_t"] + p["bproj"])

    xn2 = ln(x, p["ln2_g"], p["ln2_b"])
    hdn = _gelu_exact(xn2 @ p["w1_t"] + p["b1"])
    return x + (hdn @ p["w2_t"] + p["b2"])


if __name__ == "__main__":
    key = jax.random.PRNGKey(0)
    kx, kp = jax.random.split(key)
    x = jax.random.normal(kx, (B, N, C), jnp.float32)
    params = init_params(kp)

    out = jax.block_until_ready(block_forward(x, params))
    ref = block_reference(x, params)

    assert out.shape == (B, N, C)
    max_err = float(jnp.max(jnp.abs(out - ref)))
    assert jnp.allclose(out, ref, atol=1e-4, rtol=1e-4), (
        f"mismatch vs reference: max abs err = {max_err}")
    print("KERNEL_OK")
</pallas_src>

<mosaic_0001>
module attributes {stable_mosaic.version = 11 : i64} {
  func.func @block_kernel(%arg0: memref<16x32xf32, #tpu.memory_space<vmem>>, %arg1: memref<7x40x128xf32, #tpu.memory_space<vmem>>, %arg2: memref<16x32xf32, #tpu.memory_space<vmem>>) attributes {dimension_semantics = [], scalar_prefetch = 0 : i64, scratch_operands = 0 : i64, tpu.core_type = #tpu.core_type<tc>} {
    %c0 = arith.constant 0 : index
    %c0_0 = arith.constant 0 : index
    %0 = vector.load %arg0[%c0, %c0_0] : memref<16x32xf32, #tpu.memory_space<vmem>>, vector<16x32xf32>
    %c6 = arith.constant 6 : index
    %c0_1 = arith.constant 0 : index
    %c0_2 = arith.constant 0 : index
    %1 = vector.load %arg1[%c6, %c0_1, %c0_2] : memref<7x40x128xf32, #tpu.memory_space<vmem>>, vector<1x8x32xf32>
    %2 = vector.shape_cast %1 : vector<1x8x32xf32> to vector<8x32xf32>
    %3 = vector.extract_strided_slice %2 {offsets = [0, 0], sizes = [1, 32], strides = [1, 1]} : vector<8x32xf32> to vector<1x32xf32>
    %4 = vector.extract_strided_slice %2 {offsets = [1, 0], sizes = [1, 32], strides = [1, 1]} : vector<8x32xf32> to vector<1x32xf32>
    %5 = vector.extract_strided_slice %2 {offsets = [2, 0], sizes = [1, 32], strides = [1, 1]} : vector<8x32xf32> to vector<1x32xf32>
    %6 = vector.extract_strided_slice %2 {offsets = [3, 0], sizes = [1, 32], strides = [1, 1]} : vector<8x32xf32> to vector<1x32xf32>
    %7 = vector.extract_strided_slice %2 {offsets = [4, 0], sizes = [1, 32], strides = [1, 1]} : vector<8x32xf32> to vector<1x32xf32>
    %cst = arith.constant dense<0.000000e+00> : vector<16xf32>
    %8 = vector.multi_reduction <add>, %0, %cst [1] : vector<16x32xf32> to vector<16xf32>
    %9 = vector.shape_cast %8 : vector<16xf32> to vector<16x1xf32>
    %cst_3 = arith.constant 3.200000e+01 : f32
    %10 = vector.broadcast %cst_3 : f32 to vector<16x1xf32>
    %11 = arith.divf %9, %10 : vector<16x1xf32>
    %12 = vector.broadcast %11 : vector<16x1xf32> to vector<16x32xf32>
    %13 = arith.subf %0, %12 : vector<16x32xf32>
    %14 = arith.mulf %13, %13 : vector<16x32xf32>
    %cst_4 = arith.constant dense<0.000000e+00> : vector<16xf32>
    %15 = vector.multi_reduction <add>, %14, %cst_4 [1] : vector<16x32xf32> to vector<16xf32>
    %16 = vector.shape_cast %15 : vector<16xf32> to vector<16x1xf32>
    %cst_5 = arith.constant 3.200000e+01 : f32
    %17 = vector.broadcast %cst_5 : f32 to vector<16x1xf32>
    %18 = arith.divf %16, %17 : vector<16x1xf32>
    %19 = vector.broadcast %11 : vector<16x1xf32> to vector<16x32xf32>
    %20 = arith.subf %0, %19 : vector<16x32xf32>
    %cst_6 = arith.constant 9.99999974E-6 : f32
    %21 = vector.broadcast %cst_6 : f32 to vector<16x1xf32>
    %22 = arith.addf %18, %21 : vector<16x1xf32>
    %23 = math.rsqrt %22 : vector<16x1xf32>
    %24 = vector.broadcast %23 : vector<16x1xf32> to vector<16x32xf32>
    %25 = arith.mulf %20, %24 : vector<16x32xf32>
    %26 = vector.broadcast %3 : vector<1x32xf32> to vector<16x32xf32>
    %27 = arith.mulf %25, %26 : vector<16x32xf32>
    %28 = vector.broadcast %4 : vector<1x32xf32> to vector<16x32xf32>
    %29 = arith.addf %27, %28 : vector<16x32xf32>
    %c0_7 = arith.constant 0 : index
    %c0_8 = arith.constant 0 : index
    %c0_9 = arith.constant 0 : index
    %30 = vector.load %arg1[%c0_7, %c0_8, %c0_9] : memref<7x40x128xf32, #tpu.memory_space<vmem>>, vector<4x32x32xf32>
    %c0_10 = arith.constant 0 : index
    %c32 = arith.constant 32 : index
    %c0_11 = arith.constant 0 : index
    %31 = vector.load %arg1[%c0_10, %c32, %c0_11] : memref<7x40x128xf32, #tpu.memory_space<vmem>>, vector<4x1x24xf32>
    %32 = vector.shape_cast %29 : vector<16x32xf32> to vector<2x8x32xf32>
    %33 = vector.shape_cast %32 : vector<2x8x32xf32> to vector<1x2x8x32xf32>
    %34 = vector.shape_cast %33 : vector<1x2x8x32xf32> to vector<1x2x8x32xf32>
    %35 = vector.broadcast %34 : vector<1x2x8x32xf32> to vector<4x2x8x32xf32>
    %36 = vector.shape_cast %35 : vector<4x2x8x32xf32> to vector<8x8x32xf32>
    %37 = vector.shape_cast %30 : vector<4x32x32xf32> to vector<4x1x32x32xf32>
    %38 = vector.shape_cast %37 : vector<4x1x32x32xf32> to vector<4x1x32x32xf32>
    %39 = vector.broadcast %38 : vector<4x1x32x32xf32> to vector<4x2x32x32xf32>
    %40 = vector.shape_cast %39 : vector<4x2x32x32xf32> to vector<8x32x32xf32>
    %41 = vector.shape_cast %31 : vector<4x1x24xf32> to vector<4x1x1x24xf32>
    %42 = vector.shape_cast %41 : vector<4x1x1x24xf32> to vector<4x1x1x24xf32>
    %43 = vector.broadcast %42 : vector<4x1x1x24xf32> to vector<4x2x1x24xf32>
    %44 = vector.shape_cast %43 : vector<4x2x1x24xf32> to vector<8x1x24xf32>
    %45 = vector.extract_strided_slice %40 {offsets = [0, 0, 0], sizes = [8, 32, 24], strides = [1, 1, 1]} : vector<8x32x32xf32> to vector<8x32x24xf32>
    "tpu.trace_start"() <{level = 10 : i32, message = "snc,scd->snd"}> : () -> ()
    %cst_12 = arith.constant dense<0.000000e+00> : vector<8x8x24xf32>
    %46 = tpu.matmul %36, %45, %cst_12 {dimension_numbers = #tpu.dot_dimension_numbers<[2], [1], [1], [2], [0, 0, 0, 1, 1, 2], [0], [0]>} : vector<8x8x32xf32>, vector<8x32x24xf32>, vector<8x8x24xf32> -> vector<8x8x24xf32>
    "tpu.trace_stop"() : () -> ()
    %47 = vector.broadcast %44 : vector<8x1x24xf32> to vector<8x8x24xf32>
    %48 = arith.addf %46, %47 : vector<8x8x24xf32>
    %49 = vector.extract_strided_slice %48 {offsets = [0, 0, 0], sizes = [8, 8, 8], strides = [1, 1, 1]} : vector<8x8x24xf32> to vector<8x8x8xf32>
    %50 = vector.extract_strided_slice %48 {offsets = [0, 0, 8], sizes = [8, 8, 8], strides = [1, 1, 1]} : vector<8x8x24xf32> to vector<8x8x8xf32>
    %51 = vector.extract_strided_slice %48 {offsets = [0, 0, 16], sizes = [8, 8, 8], strides = [1, 1, 1]} : vector<8x8x24xf32> to vector<8x8x8xf32>
    "tpu.trace_start"() <{level = 10 : i32, message = "sqd,skd->sqk"}> : () -> ()
    %cst_13 = arith.constant dense<0.000000e+00> : vector<8x8x8xf32>
    %52 = tpu.matmul %49, %50, %cst_13 {dimension_numbers = #tpu.dot_dimension_numbers<[2], [2], [1], [1], [0, 0, 0, 1, 1, 1], [0], [0]>} : vector<8x8x8xf32>, vector<8x8x8xf32>, vector<8x8x8xf32> -> vector<8x8x8xf32>
    "tpu.trace_stop"() : () -> ()
    %cst_14 = arith.constant dense<0xFF800000> : vector<8x8xf32>
    %53 = vector.multi_reduction <maximumf>, %52, %cst_14 [2] : vector<8x8x8xf32> to vector<8x8xf32>
    %54 = vector.shape_cast %53 : vector<8x8xf32> to vector<8x8x1xf32>
    %55 = vector.broadcast %54 : vector<8x8x1xf32> to vector<8x8x8xf32>
    %56 = arith.subf %52, %55 : vector<8x8x8xf32>
    %57 = math.exp %56 : vector<8x8x8xf32>
    %cst_15 = arith.constant dense<0.000000e+00> : vector<8x8xf32>
    %58 = vector.multi_reduction <add>, %57, %cst_15 [2] : vector<8x8x8xf32> to vector<8x8xf32>
    %59 = vector.shape_cast %58 : vector<8x8xf32> to vector<8x8x1xf32>
    %60 = vector.broadcast %59 : vector<8x8x1xf32> to vector<8x8x8xf32>
    %61 = arith.divf %57, %60 : vector<8x8x8xf32>
    "tpu.trace_start"() <{level = 10 : i32, message = "sqk,skd->sqd"}> : () -> ()
    %cst_16 = arith.constant dense<0.000000e+00> : vector<8x8x8xf32>
    %62 = tpu.matmul %61, %51, %cst_16 {dimension_numbers = #tpu.dot_dimension_numbers<[2], [1], [1], [2], [0, 0, 0, 1, 1, 2], [0], [0]>} : vector<8x8x8xf32>, vector<8x8x8xf32>, vector<8x8x8xf32> -> vector<8x8x8xf32>
    "tpu.trace_stop"() : () -> ()
    %63 = vector.extract_strided_slice %40 {offsets = [0, 0, 24], sizes = [8, 32, 8], strides = [1, 1, 1]} : vector<8x32x32xf32> to vector<8x32x8xf32>
    "tpu.trace_start"() <{level = 10 : i32, message = "snd,scd->snc"}> : () -> ()
    %cst_17 = arith.constant dense<0.000000e+00> : vector<8x8x32xf32>
    %64 = tpu.matmul %62, %63, %cst_17 {dimension_numbers = #tpu.dot_dimension_numbers<[2], [2], [1], [1], [0, 0, 0, 1, 1, 1], [0], [0]>} : vector<8x8x8xf32>, vector<8x32x8xf32>, vector<8x8x32xf32> -> vector<8x8x32xf32>
    "tpu.trace_stop"() : () -> ()
    %65 = vector.shape_cast %64 : vector<8x8x32xf32> to vector<4x2x8x32xf32>
    %cst_18 = arith.constant dense<0.000000e+00> : vector<2x8x32xf32>
    %66 = vector.multi_reduction <add>, %65, %cst_18 [0] : vector<4x2x8x32xf32> to vector<2x8x32xf32>
    %67 = vector.shape_cast %66 : vector<2x8x32xf32> to vector<16x32xf32>
    %68 = vector.broadcast %7 : vector<1x32xf32> to vector<16x32xf32>
    %69 = arith.addf %67, %68 : vector<16x32xf32>
    %70 = arith.addf %0, %69 : vector<16x32xf32>
    %cst_19 = arith.constant dense<0.000000e+00> : vector<16xf32>
    %71 = vector.multi_reduction <add>, %70, %cst_19 [1] : vector<16x32xf32> to vector<16xf32>
    %72 = vector.shape_cast %71 : vector<16xf32> to vector<16x1xf32>
    %cst_20 = arith.constant 3.200000e+01 : f32
    %73 = vector.broadcast %cst_20 : f32 to vector<16x1xf32>
    %74 = arith.divf %72, %73 : vector<16x1xf32>
    %75 = vector.broadcast %74 : vector<16x1xf32> to vector<16x32xf32>
    %76 = arith.subf %70, %75 : vector<16x32xf32>
    %77 = arith.mulf %76, %76 : vector<16x32xf32>
    %cst_21 = arith.constant dense<0.000000e+00> : vector<16xf32>
    %78 = vector.multi_reduction <add>, %77, %cst_21 [1] : vector<16x32xf32> to vector<16xf32>
    %79 = vector.shape_cast %78 : vector<16xf32> to vector<16x1xf32>
    %cst_22 = arith.constant 3.200000e+01 : f32
    %80 = vector.broadcast %cst_22 : f32 to vector<16x1xf32>
    %81 = arith.divf %79, %80 : vector<16x1xf32>
    %82 = vector.broadcast %74 : vector<16x1xf32> to vector<16x32xf32>
    %83 = arith.subf %70, %82 : vector<16x32xf32>
    %cst_23 = arith.constant 9.99999974E-6 : f32
    %84 = vector.broadcast %cst_23 : f32 to vector<16x1xf32>
    %85 = arith.addf %81, %84 : vector<16x1xf32>
    %86 = math.rsqrt %85 : vector<16x1xf32>
    %87 = vector.broadcast %86 : vector<16x1xf32> to vector<16x32xf32>
    %88 = arith.mulf %83, %87 : vector<16x32xf32>
    %89 = vector.broadcast %5 : vector<1x32xf32> to vector<16x32xf32>
    %90 = arith.mulf %88, %89 : vector<16x32xf32>
    %91 = vector.broadcast %6 : vector<1x32xf32> to vector<16x32xf32>
    %92 = arith.addf %90, %91 : vector<16x32xf32>
    %c4 = arith.constant 4 : index
    %c0_24 = arith.constant 0 : index
    %c0_25 = arith.constant 0 : index
    %93 = vector.load %arg1[%c4, %c0_24, %c0_25] : memref<7x40x128xf32, #tpu.memory_space<vmem>>, vector<1x32x128xf32>
    %94 = vector.shape_cast %93 : vector<1x32x128xf32> to vector<32x128xf32>
    %c4_26 = arith.constant 4 : index
    %c32_27 = arith.constant 32 : index
    %c0_28 = arith.constant 0 : index
    %95 = vector.load %arg1[%c4_26, %c32_27, %c0_28] : memref<7x40x128xf32, #tpu.memory_space<vmem>>, vector<1x1x128xf32>
    %96 = vector.shape_cast %95 : vector<1x1x128xf32> to vector<1x128xf32>
    %cst_29 = arith.constant dense<0.000000e+00> : vector<16x128xf32>
    %97 = tpu.matmul %92, %94, %cst_29 {dimension_numbers = #tpu.dot_dimension_numbers<[1], [0], [0], [1], [0, 0, 1, 1], [], []>} : vector<16x32xf32>, vector<32x128xf32>, vector<16x128xf32> -> vector<16x128xf32>
    %98 = vector.broadcast %96 : vector<1x128xf32> to vector<16x128xf32>
    %99 = arith.addf %97, %98 : vector<16x128xf32>
    %cst_30 = arith.constant 5.000000e-01 : f32
    %100 = vector.broadcast %cst_30 : f32 to vector<16x128xf32>
    %101 = arith.mulf %100, %99 : vector<16x128xf32>
    %cst_31 = arith.constant 2.000000e+00 : f32
    %102 = math.sqrt %cst_31 : f32
    %103 = vector.broadcast %102 : f32 to vector<16x128xf32>
    %104 = arith.divf %99, %103 : vector<16x128xf32>
    %105 = math.erf %104 : vector<16x128xf32>
    %cst_32 = arith.constant 1.000000e+00 : f32
    %106 = vector.broadcast %cst_32 : f32 to vector<16x128xf32>
    %107 = arith.addf %106, %105 : vector<16x128xf32>
    %108 = arith.mulf %101, %107 : vector<16x128xf32>
    %c5 = arith.constant 5 : index
    %c0_33 = arith.constant 0 : index
    %c0_34 = arith.constant 0 : index
    %109 = vector.load %arg1[%c5, %c0_33, %c0_34] : memref<7x40x128xf32, #tpu.memory_space<vmem>>, vector<1x32x128xf32>
    %110 = vector.shape_cast %109 : vector<1x32x128xf32> to vector<32x128xf32>
    %c5_35 = arith.constant 5 : index
    %c32_36 = arith.constant 32 : index
    %c0_37 = arith.constant 0 : index
    %111 = vector.load %arg1[%c5_35, %c32_36, %c0_37] : memref<7x40x128xf32, #tpu.memory_space<vmem>>, vector<1x1x32xf32>
    %112 = vector.shape_cast %111 : vector<1x1x32xf32> to vector<1x32xf32>
    %cst_38 = arith.constant dense<0.000000e+00> : vector<16x32xf32>
    %113 = tpu.matmul %108, %110, %cst_38 {dimension_numbers = #tpu.dot_dimension_numbers<[1], [1], [0], [0], [0, 0, 1, 0], [], []>} : vector<16x128xf32>, vector<32x128xf32>, vector<16x32xf32> -> vector<16x32xf32>
    %114 = vector.broadcast %112 : vector<1x32xf32> to vector<16x32xf32>
    %115 = arith.addf %113, %114 : vector<16x32xf32>
    %116 = arith.addf %70, %115 : vector<16x32xf32>
    %c0_39 = arith.constant 0 : index
    %c0_40 = arith.constant 0 : index
    %117 = vector.load %arg2[%c0_39, %c0_40] : memref<16x32xf32, #tpu.memory_space<vmem>>, vector<16x32xf32>
    tpu.vector_store %arg2[%c0_39, %c0_40], %116 {strides = array<i32>} : memref<16x32xf32, #tpu.memory_space<vmem>>, vector<16x32xf32>,
    return
  }
}

</mosaic_0001>

<llo_original>
// kernel: tpu_custom_call.1
$region0: #{tpu_custom_call.1}
  #allocation0 [shape = 'u32[]', space=smem, size = 0x4, offset = 0x4, fixed_abs, tag = 'smem constant byte address 0x4 - core index']
  #allocation1 [shape = 'u32[72,128]{1,0:T(1,128)}', space=vmem, size = 0x9000, scoped, tag = 'internal scratch']
  %s0 = inlined_call_operand.hbm [shape: f32[16,32], index: 0, kind: input, shape index: {}]
  %s1 = inlined_call_operand.hbm [shape: f32[7,40,128], index: 1, kind: input, shape index: {}]
  %s2 = inlined_call_operand.hbm [shape: f32[16,32], index: 2, kind: output, shape index: {}]
  %s3 = sld [smem:[#allocation0]]
  $region26: #{tpu_custom_call.1} parent=0
    _
  %s5 = ssub.s32 1, %s3
  %s6 = scalar_select 0, %s5, %s3
  $region1: #{tpu_custom_call.1} parent=0
    #allocation2 [shape = 'u8[8192]{0}', space=vmem, size = 0x2000, scoped, tag = 'input window, operand 0, single buffered']
    #allocation3 [shape = 's32[1]{0}', space=sflag, size = 0x4, scoped, tag = 'scoped memory for tpu_custom_call.1']
    #allocation4 [shape = 's32[1]{0}', space=sflag, size = 0x4, scoped, tag = 'scoped memory for tpu_custom_call.1']
    #allocation5 [shape = 'u8[143360]{0}', space=vmem, size = 0x23000, scoped, tag = 'input window, operand 1, single buffered']
    #allocation6 [shape = 's32[1]{0}', space=sflag, size = 0x4, scoped, tag = 'scoped memory for tpu_custom_call.1']
    #allocation7 [shape = 'u8[8192]{0}', space=vmem, size = 0x2000, scoped, tag = 'output window, operand 0, single buffered']
    %7 = vsyncpa [#allocation3], 0
    %8 = vsyncpa [#allocation6], 0
    %9 = vsyncpa [#allocation4], 0
    // Predicated region
    $region2: #{tpu_custom_call.1} parent=1 // pred_check
      _
    $region3: #{tpu_custom_call.1} parent=1 // pred_check_branch
      %11 = sbr.rel (0) target = $region5
    $region4: #{tpu_custom_call.1} parent=1 // pred_region
      %13 = vsyncadd [#allocation3], 0
      %s14 = sshll.u32 %s0, 4
      %s15 = int_to_ptr.hbm [resolvable:$true] %s14
      %s16 = sshll.u32 [#allocation2], 4
      %s17 = int_to_ptr.vmem [resolvable:$true] %s16
      %22 = dma.hbm_to_vmem [thread:$0]  %s15, 256, %s17, [#allocation3], 128, 128, 8
    $region5: #{tpu_custom_call.1} parent=1 // pred_fallthru
      _
    // Predicated region
    $region6: #{tpu_custom_call.1} parent=1 // pred_check
      _
    $region7: #{tpu_custom_call.1} parent=1 // pred_check_branch
      %24 = sbr.rel (0) target = $region9
    $region8: #{tpu_custom_call.1} parent=1 // pred_region
      %26 = vsyncadd [#allocation6], 0
      %s27 = sshll.u32 %s1, 4
      %s28 = int_to_ptr.hbm [resolvable:$true] %s27
      %s29 = sshll.u32 [#allocation5], 4
      %s30 = int_to_ptr.vmem [resolvable:$true] %s29
      %35 = dma.hbm_to_vmem [thread:$0]  %s28, 4480, %s30, [#allocation6], 128, 128, 8
    $region9: #{tpu_custom_call.1} parent=1 // pred_fallthru
      _
    // Predicated region
    $region10: #{tpu_custom_call.1} parent=1 // pred_check
      _
    $region11: #{tpu_custom_call.1} parent=1 // pred_check_branch
      %37 = sbr.rel (0) target = $region13
    $region12: #{tpu_custom_call.1} parent=1 // pred_region
      %39 = dma.done [#allocation3], 256
    $region13: #{tpu_custom_call.1} parent=1 // pred_fallthru
      _
    // Predicated region
    $region14: #{tpu_custom_call.1} parent=1 // pred_check
      _
    $region15: #{tpu_custom_call.1} parent=1 // pred_check_branch
      %41 = sbr.rel (0) target = $region17
    $region16: #{tpu_custom_call.1} parent=1 // pred_region
      %43 = dma.done [#allocation6], 4480
    $region17: #{tpu_custom_call.1} parent=1 // pred_fallthru
      _
    %v44 = vld [vmem:[#allocation2] sm:$0xff]
    %v45 = vld [vmem:[#allocation2 + $0x8] sm:$0xff]
    %s46 = scalar_lea.vmem [#allocation5], 240
    %v47 = vld [vmem:[%s46] sm:$0xff]
    %vm48 = vcmask 261120
    %v49 = vsel %vm48, %v44, 0.0
    %50 = vadd.xlane.f32.xlu0 %v49
    %v51 = vpop.xlane.xlu0 %50
    %v52 = vsel %vm48, %v45, 0.0
    %53 = vadd.xlane.f32.xlu0 %v52
    %v54 = vpop.xlane.xlu0 %53
    %v55 = vrcp.pop 32.0
    %v56 = vmul.f32 32.0, %v55
    %v57 = vsub.f32 1.0, %v56
    %v58 = vmul.f32 %v55, %v57
    %v59 = vadd.f32 %v55, %v58
    %vm60 = vweird.f32 %v55
    %v61 = vsel %vm60, %v55, %v59
    %v62 = vmul.f32 %v51, %v61
    %v63 = vmul.f32 %v54, %v61
    %v64 = vsub.f32 %v44, %v62
    %v65 = vsub.f32 %v45, %v63
    %v66 = vmul.f32 %v64, %v64
    %v67 = vmul.f32 %v65, %v65
    %v68 = vsel %vm48, %v66, 0.0
    %69 = vadd.xlane.f32.xlu0 %v68
    %v70 = vpop.xlane.xlu0 %69
    %v71 = vsel %vm48, %v67, 0.0
    %72 = vadd.xlane.f32.xlu0 %v71
    %v73 = vpop.xlane.xlu0 %72
    %v74 = vmul.f32 %v70, %v61
    %v75 = vmul.f32 %v73, %v61
    %v76 = vadd.f32 %v74, 1e-05
    %v77 = vadd.f32 %v75, 1e-05
    %v78 = vrsqrt.pop %v76
    %v79 = vmul.f32 %v78, %v76
    %v80 = vmul.f32 %v79, %v78
    %v81 = vmul.f32 0.5, %v80
    %v82 = vsub.f32 1.5, %v81
    %v83 = vmul.f32 %v78, %v82
    %vm84 = vweird.f32 %v76
    %vm85 = vweird.f32 %v78
    %vm86 = vmor %vm84, %vm85
    %v87 = vsel %vm86, %v78, %v83
    %v88 = vrsqrt.pop %v77
    %v89 = vmul.f32 %v88, %v77
    %v90 = vmul.f32 %v89, %v88
    %v91 = vmul.f32 0.5, %v90
    %v92 = vsub.f32 1.5, %v91
    %v93 = vmul.f32 %v88, %v92
    %vm94 = vweird.f32 %v77
    %vm95 = vweird.f32 %v88
    %vm96 = vmor %vm94, %vm95
    %v97 = vsel %vm96, %v88, %v93
    %v98 = vmul.f32 %v64, %v87
    %v99 = vmul.f32 %v65, %v97
    %v100 = vperm.slane %v47, 0
    %v101 = vmul.f32 %v98, %v100
    %v102 = vmul.f32 %v99, %v100
    %v103 = vperm.slane %v47, 1
    %v104 = vadd.f32 %v101, %v103
    %v105 = vadd.f32 %v102, %v103
    %v106 = vld [vmem:[#allocation5] sm:$0xff]
    %v107 = vld [vmem:[#allocation5 + $0x8] sm:$0xff]
    %v108 = vld [vmem:[#allocation5 + $0x10] sm:$0xff]
    %v109 = vld [vmem:[#allocation5 + $0x18] sm:$0xff]
    %v110 = vld [vmem:[#allocation5 + $0x28] sm:$0xff]
    %v111 = vld [vmem:[#allocation5 + $0x30] sm:$0xff]
    %v112 = vld [vmem:[#allocation5 + $0x38] sm:$0xff]
    %v113 = vld [vmem:[#allocation5 + $0x40] sm:$0xff]
    %v114 = vld [vmem:[#allocation5 + $0x50] sm:$0xff]
    %v115 = vld [vmem:[#allocation5 + $0x58] sm:$0xff]
    %v116 = vld [vmem:[#allocation5 + $0x60] sm:$0xff]
    %v117 = vld [vmem:[#allocation5 + $0x68] sm:$0xff]
    %v118 = vld [vmem:[#allocation5 + $0x78] sm:$0xff]
    %v119 = vld [vmem:[#allocation5 + $0x80] sm:$0xff]
    %v120 = vld [vmem:[#allocation5 + $0x88] sm:$0xff]
    %v121 = vld [vmem:[#allocation5 + $0x90] sm:$0xff]
    %v122 = vld [vmem:[#allocation5 + $0x20] sm:$0x1]
    %v123 = vld [vmem:[#allocation5 + $0x48] sm:$0x1]
    %v124 = vld [vmem:[#allocation5 + $0x70] sm:$0x1]
    %v125 = vld [vmem:[#allocation5 + $0x98] sm:$0x1]
    %v126 = vperm.slane %v122, 0
    %v127 = vperm.slane %v123, 0
    %v128 = vperm.slane %v124, 0
    %v129 = vperm.slane %v125, 0
    %v131 = vsel %vm48, %v104, 0
    %133 = vmatpush.msra.mxu0 0.0
    %134 = vmatpush.msra.mxu0 0.0
    %135 = vmatpush.msra.mxu0 0.0
    %136 = vmatpush.msra.mxu0 0.0
    %137 = vmatpush.msra.mxu0 0.0
    %138 = vmatpush.msra.mxu0 0.0
    %139 = vmatpush.msra.mxu0 0.0
    %140 = vmatpush.msra.mxu0 0.0
    %141 = vmatpush.msra.mxu0 0.0
    %142 = vmatpush.msra.mxu0 0.0
    %143 = vmatpush.msra.mxu0 0.0
    %144 = vmatpush.msra.mxu0 0.0
    %145 = vmatpush.msra.mxu0 %v109
    %146 = vmatpush.msra.mxu0 %v108
    %147 = vmatpush.msra.mxu0 %v107
    %148 = vmatpush.msra.mxu0 %v106
    %149 = vmatmul.f32.gmra.mxu0 %v131
    %v150 = vpop.f32.mrf.mxu0
    %v151 = vadd.f32 %v126, %v150
    %152 = vdwg.mxu0
    %v154 = vsel %vm48, %v105, 0
    %156 = vmatpush.msra.mxu0 0.0
    %157 = vmatpush.msra.mxu0 0.0
    %158 = vmatpush.msra.mxu0 0.0
    %159 = vmatpush.msra.mxu0 0.0
    %160 = vmatpush.msra.mxu0 0.0
    %161 = vmatpush.msra.mxu0 0.0
    %162 = vmatpush.msra.mxu0 0.0
    %163 = vmatpush.msra.mxu0 0.0
    %164 = vmatpush.msra.mxu0 0.0
    %165 = vmatpush.msra.mxu0 0.0
    %166 = vmatpush.msra.mxu0 0.0
    %167 = vmatpush.msra.mxu0 0.0
    %168 = vmatpush.msra.mxu0 %v109
    %169 = vmatpush.msra.mxu0 %v108
    %170 = vmatpush.msra.mxu0 %v107
    %171 = vmatpush.msra.mxu0 %v106
    %172 = vmatmul.f32.gmra.mxu0 %v154
    %v173 = vpop.f32.mrf.mxu0
    %v174 = vadd.f32 %v126, %v173
    %175 = vdwg.mxu0
    %176 = vmatpush.msra.mxu0 0.0
    %177 = vmatpush.msra.mxu0 0.0
    %178 = vmatpush.msra.mxu0 0.0
    %179 = vmatpush.msra.mxu0 0.0
    %180 = vmatpush.msra.mxu0 0.0
    %181 = vmatpush.msra.mxu0 0.0
    %182 = vmatpush.msra.mxu0 0.0
    %183 = vmatpush.msra.mxu0 0.0
    %184 = vmatpush.msra.mxu0 0.0
    %185 = vmatpush.msra.mxu0 0.0
    %186 = vmatpush.msra.mxu0 0.0
    %187 = vmatpush.msra.mxu0 0.0
    %188 = vmatpush.msra.mxu0 %v113
    %189 = vmatpush.msra.mxu0 %v112
    %190 = vmatpush.msra.mxu0 %v111
    %191 = vmatpush.msra.mxu0 %v110
    %192 = vmatmul.f32.gmra.mxu0 %v131
    %v193 = vpop.f32.mrf.mxu0
    %v194 = vadd.f32 %v127, %v193
    %195 = vdwg.mxu0
    %196 = vmatpush.msra.mxu0 0.0
    %197 = vmatpush.msra.mxu0 0.0
    %198 = vmatpush.msra.mxu0 0.0
    %199 = vmatpush.msra.mxu0 0.0
    %200 = vmatpush.msra.mxu0 0.0
    %201 = vmatpush.msra.mxu0 0.0
    %202 = vmatpush.msra.mxu0 0.0
    %203 = vmatpush.msra.mxu0 0.0
    %204 = vmatpush.msra.mxu0 0.0
    %205 = vmatpush.msra.mxu0 0.0
    %206 = vmatpush.msra.mxu0 0.0
    %207 = vmatpush.msra.mxu0 0.0
    %208 = vmatpush.msra.mxu0 %v113
    %209 = vmatpush.msra.mxu0 %v112
    %210 = vmatpush.msra.mxu0 %v111
    %211 = vmatpush.msra.mxu0 %v110
    %212 = vmatmul.f32.gmra.mxu0 %v154
    %v213 = vpop.f32.mrf.mxu0
    %v214 = vadd.f32 %v127, %v213
    %215 = vdwg.mxu0
    %216 = vmatpush.msra.mxu0 0.0
    %217 = vmatpush.msra.mxu0 0.0
    %218 = vmatpush.msra.mxu0 0.0
    %219 = vmatpush.msra.mxu0 0.0
    %220 = vmatpush.msra.mxu0 0.0
    %221 = vmatpush.msra.mxu0 0.0
    %222 = vmatpush.msra.mxu0 0.0
    %223 = vmatpush.msra.mxu0 0.0
    %224 = vmatpush.msra.mxu0 0.0
    %225 = vmatpush.msra.mxu0 0.0
    %226 = vmatpush.msra.mxu0 0.0
    %227 = vmatpush.msra.mxu0 0.0
    %228 = vmatpush.msra.mxu0 %v117
    %229 = vmatpush.msra.mxu0 %v116
    %230 = vmatpush.msra.mxu0 %v115
    %231 = vmatpush.msra.mxu0 %v114
    %232 = vmatmul.f32.gmra.mxu0 %v131
    %v233 = vpop.f32.mrf.mxu0
    %v234 = vadd.f32 %v128, %v233
    %235 = vdwg.mxu0
    %236 = vmatpush.msra.mxu0 0.0
    %237 = vmatpush.msra.mxu0 0.0
    %238 = vmatpush.msra.mxu0 0.0
    %239 = vmatpush.msra.mxu0 0.0
    %240 = vmatpush.msra.mxu0 0.0
    %241 = vmatpush.msra.mxu0 0.0
    %242 = vmatpush.msra.mxu0 0.0
    %243 = vmatpush.msra.mxu0 0.0
    %244 = vmatpush.msra.mxu0 0.0
    %245 = vmatpush.msra.mxu0 0.0
    %246 = vmatpush.msra.mxu0 0.0
    %247 = vmatpush.msra.mxu0 0.0
    %248 = vmatpush.msra.mxu0 %v117
    %249 = vmatpush.msra.mxu0 %v116
    %250 = vmatpush.msra.mxu0 %v115
    %251 = vmatpush.msra.mxu0 %v114
    %252 = vmatmul.f32.gmra.mxu0 %v154
    %v253 = vpop.f32.mrf.mxu0
    %v254 = vadd.f32 %v128, %v253
    %255 = vdwg.mxu0
    %256 = vmatpush.msra.mxu0 0.0
    %257 = vmatpush.msra.mxu0 0.0
    %258 = vmatpush.msra.mxu0 0.0
    %259 = vmatpush.msra.mxu0 0.0
    %260 = vmatpush.msra.mxu0 0.0
    %261 = vmatpush.msra.mxu0 0.0
    %262 = vmatpush.msra.mxu0 0.0
    %263 = vmatpush.msra.mxu0 0.0
    %264 = vmatpush.msra.mxu0 0.0
    %265 = vmatpush.msra.mxu0 0.0
    %266 = vmatpush.msra.mxu0 0.0
    %267 = vmatpush.msra.mxu0 0.0
    %268 = vmatpush.msra.mxu0 %v121
    %269 = vmatpush.msra.mxu0 %v120
    %270 = vmatpush.msra.mxu0 %v119
    %271 = vmatpush.msra.mxu0 %v118
    %272 = vmatmul.f32.gmra.mxu0 %v131
    %v273 = vpop.f32.mrf.mxu0
    %v274 = vadd.f32 %v129, %v273
    %275 = vdwg.mxu0
    %276 = vmatpush.msra.mxu0 0.0
    %277 = vmatpush.msra.mxu0 0.0
    %278 = vmatpush.msra.mxu0 0.0
    %279 = vmatpush.msra.mxu0 0.0
    %280 = vmatpush.msra.mxu0 0.0
    %281 = vmatpush.msra.mxu0 0.0
    %282 = vmatpush.msra.mxu0 0.0
    %283 = vmatpush.msra.mxu0 0.0
    %284 = vmatpush.msra.mxu0 0.0
    %285 = vmatpush.msra.mxu0 0.0
    %286 = vmatpush.msra.mxu0 0.0
    %287 = vmatpush.msra.mxu0 0.0
    %288 = vmatpush.msra.mxu0 %v121
    %289 = vmatpush.msra.mxu0 %v120
    %290 = vmatpush.msra.mxu0 %v119
    %291 = vmatpush.msra.mxu0 %v118
    %292 = vmatmul.f32.gmra.mxu0 %v154
    %v293 = vpop.f32.mrf.mxu0
    %v294 = vadd.f32 %v129, %v293
    %295 = vdwg.mxu0
    %297 = vrot.lane.b32.xlu0 %v151, 120
    %v298 = vpop.permute.xlu0 %297
    %vm299 = vcmask 64512
    %v300 = vsel %vm299, %v151, 0
    %v302 = vsel %vm299, %v298, 0
    %304 = vmatpush.xpose.msra.mxu0 0.0
    %305 = vmatpush.xpose.msra.mxu0 0.0
    %306 = vmatpush.xpose.msra.mxu0 0.0
    %307 = vmatpush.xpose.msra.mxu0 0.0
    %308 = vmatpush.xpose.msra.mxu0 0.0
    %309 = vmatpush.xpose.msra.mxu0 0.0
    %310 = vmatpush.xpose.msra.mxu0 0.0
    %311 = vmatpush.xpose.msra.mxu0 0.0
    %312 = vmatpush.xpose.msra.mxu0 0.0
    %313 = vmatpush.xpose.msra.mxu0 0.0
    %314 = vmatpush.xpose.msra.mxu0 0.0
    %315 = vmatpush.xpose.msra.mxu0 0.0
    %316 = vmatpush.xpose.msra.mxu0 0.0
    %317 = vmatpush.xpose.msra.mxu0 0.0
    %318 = vmatpush.xpose.msra.mxu0 0.0
    %319 = vmatpush.xpose.msra.mxu0 %v302
    %320 = vmatmul.f32.gmra.mxu0 %v300
    %v321 = vpop.f32.mrf.mxu0
    %v322 = vadd.f32 0.0, %v321
    %323 = vdwg.mxu0
    %325 = vrot.lane.b32.xlu0 %v174, 120
    %v326 = vpop.permute.xlu0 %325
    %v327 = vsel %vm299, %v174, 0
    %v329 = vsel %vm299, %v326, 0
    %331 = vmatpush.xpose.msra.mxu0 0.0
    %332 = vmatpush.xpose.msra.mxu0 0.0
    %333 = vmatpush.xpose.msra.mxu0 0.0
    %334 = vmatpush.xpose.msra.mxu0 0.0
    %335 = vmatpush.xpose.msra.mxu0 0.0
    %336 = vmatpush.xpose.msra.mxu0 0.0
    %337 = vmatpush.xpose.msra.mxu0 0.0
    %338 = vmatpush.xpose.msra.mxu0 0.0
    %339 = vmatpush.xpose.msra.mxu0 0.0
    %340 = vmatpush.xpose.msra.mxu0 0.0
    %341 = vmatpush.xpose.msra.mxu0 0.0
    %342 = vmatpush.xpose.msra.mxu0 0.0
    %343 = vmatpush.xpose.msra.mxu0 0.0
    %344 = vmatpush.xpose.msra.mxu0 0.0
    %345 = vmatpush.xpose.msra.mxu0 0.0
    %346 = vmatpush.xpose.msra.mxu0 %v329
    %347 = vmatmul.f32.gmra.mxu0 %v327
    %v348 = vpop.f32.mrf.mxu0
    %v349 = vadd.f32 0.0, %v348
    %350 = vdwg.mxu0
    %352 = vrot.lane.b32.xlu0 %v194, 120
    %v353 = vpop.permute.xlu0 %352
    %v354 = vsel %vm299, %v194, 0
    %v356 = vsel %vm299, %v353, 0
    %358 = vmatpush.xpose.msra.mxu0 0.0
    %359 = vmatpush.xpose.msra.mxu0 0.0
    %360 = vmatpush.xpose.msra.mxu0 0.0
    %361 = vmatpush.xpose.msra.mxu0 0.0
    %362 = vmatpush.xpose.msra.mxu0 0.0
    %363 = vmatpush.xpose.msra.mxu0 0.0
    %364 = vmatpush.xpose.msra.mxu0 0.0
    %365 = vmatpush.xpose.msra.mxu0 0.0
    %366 = vmatpush.xpose.msra.mxu0 0.0
    %367 = vmatpush.xpose.msra.mxu0 0.0
    %368 = vmatpush.xpose.msra.mxu0 0.0
    %369 = vmatpush.xpose.msra.mxu0 0.0
    %370 = vmatpush.xpose.msra.mxu0 0.0
    %371 = vmatpush.xpose.msra.mxu0 0.0
    %372 = vmatpush.xpose.msra.mxu0 0.0
    %373 = vmatpush.xpose.msra.mxu0 %v356
    %374 = vmatmul.f32.gmra.mxu0 %v354
    %v375 = vpop.f32.mrf.mxu0
    %v376 = vadd.f32 0.0, %v375
    %377 = vdwg.mxu0
    %379 = vrot.lane.b32.xlu0 %v214, 120
    %v380 = vpop.permute.xlu0 %379
    %v381 = vsel %vm299, %v214, 0
    %v383 = vsel %vm299, %v380, 0
    %385 = vmatpush.xpose.msra.mxu0 0.0
    %386 = vmatpush.xpose.msra.mxu0 0.0
    %387 = vmatpush.xpose.msra.mxu0 0.0
    %388 = vmatpush.xpose.msra.mxu0 0.0
    %389 = vmatpush.xpose.msra.mxu0 0.0
    %390 = vmatpush.xpose.msra.mxu0 0.0
    %391 = vmatpush.xpose.msra.mxu0 0.0
    %392 = vmatpush.xpose.msra.mxu0 0.0
    %393 = vmatpush.xpose.msra.mxu0 0.0
    %394 = vmatpush.xpose.msra.mxu0 0.0
    %395 = vmatpush.xpose.msra.mxu0 0.0
    %396 = vmatpush.xpose.msra.mxu0 0.0
    %397 = vmatpush.xpose.msra.mxu0 0.0
    %398 = vmatpush.xpose.msra.mxu0 0.0
    %399 = vmatpush.xpose.msra.mxu0 0.0
    %400 = vmatpush.xpose.msra.mxu0 %v383
    %401 = vmatmul.f32.gmra.mxu0 %v381
    %v402 = vpop.f32.mrf.mxu0
    %v403 = vadd.f32 0.0, %v402
    %404 = vdwg.mxu0
    %406 = vrot.lane.b32.xlu0 %v234, 120
    %v407 = vpop.permute.xlu0 %406
    %v408 = vsel %vm299, %v234, 0
    %v410 = vsel %vm299, %v407, 0
    %412 = vmatpush.xpose.msra.mxu0 0.0
    %413 = vmatpush.xpose.msra.mxu0 0.0
    %414 = vmatpush.xpose.msra.mxu0 0.0
    %415 = vmatpush.xpose.msra.mxu0 0.0
    %416 = vmatpush.xpose.msra.mxu0 0.0
    %417 = vmatpush.xpose.msra.mxu0 0.0
    %418 = vmatpush.xpose.msra.mxu0 0.0
    %419 = vmatpush.xpose.msra.mxu0 0.0
    %420 = vmatpush.xpose.msra.mxu0 0.0
    %421 = vmatpush.xpose.msra.mxu0 0.0
    %422 = vmatpush.xpose.msra.mxu0 0.0
    %423 = vmatpush.xpose.msra.mxu0 0.0
    %424 = vmatpush.xpose.msra.mxu0 0.0
    %425 = vmatpush.xpose.msra.mxu0 0.0
    %426 = vmatpush.xpose.msra.mxu0 0.0
    %427 = vmatpush.xpose.msra.mxu0 %v410
    %428 = vmatmul.f32.gmra.mxu0 %v408
    %v429 = vpop.f32.mrf.mxu0
    %v430 = vadd.f32 0.0, %v429
    %431 = vdwg.mxu0
    %433 = vrot.lane.b32.xlu0 %v254, 120
    %v434 = vpop.permute.xlu0 %433
    %v435 = vsel %vm299, %v254, 0
    %v437 = vsel %vm299, %v434, 0
    %439 = vmatpush.xpose.msra.mxu0 0.0
    %440 = vmatpush.xpose.msra.mxu0 0.0
    %441 = vmatpush.xpose.msra.mxu0 0.0
    %442 = vmatpush.xpose.msra.mxu0 0.0
    %443 = vmatpush.xpose.msra.mxu0 0.0
    %444 = vmatpush.xpose.msra.mxu0 0.0
    %445 = vmatpush.xpose.msra.mxu0 0.0
    %446 = vmatpush.xpose.msra.mxu0 0.0
    %447 = vmatpush.xpose.msra.mxu0 0.0
    %448 = vmatpush.xpose.msra.mxu0 0.0
    %449 = vmatpush.xpose.msra.mxu0 0.0
    %450 = vmatpush.xpose.msra.mxu0 0.0
    %451 = vmatpush.xpose.msra.mxu0 0.0
    %452 = vmatpush.xpose.msra.mxu0 0.0
    %453 = vmatpush.xpose.msra.mxu0 0.0
    %454 = vmatpush.xpose.msra.mxu0 %v437
    %455 = vmatmul.f32.gmra.mxu0 %v435
    %v456 = vpop.f32.mrf.mxu0
    %v457 = vadd.f32 0.0, %v456
    %458 = vdwg.mxu0
    %460 = vrot.lane.b32.xlu0 %v274, 120
    %v461 = vpop.permute.xlu0 %460
    %v462 = vsel %vm299, %v274, 0
    %v464 = vsel %vm299, %v461, 0
    %466 = vmatpush.xpose.msra.mxu0 0.0
    %467 = vmatpush.xpose.msra.mxu0 0.0
    %468 = vmatpush.xpose.msra.mxu0 0.0
    %469 = vmatpush.xpose.msra.mxu0 0.0
    %470 = vmatpush.xpose.msra.mxu0 0.0
    %471 = vmatpush.xpose.msra.mxu0 0.0
    %472 = vmatpush.xpose.msra.mxu0 0.0
    %473 = vmatpush.xpose.msra.mxu0 0.0
    %474 = vmatpush.xpose.msra.mxu0 0.0
    %475 = vmatpush.xpose.msra.mxu0 0.0
    %476 = vmatpush.xpose.msra.mxu0 0.0
    %477 = vmatpush.xpose.msra.mxu0 0.0
    %478 = vmatpush.xpose.msra.mxu0 0.0
    %479 = vmatpush.xpose.msra.mxu0 0.0
    %480 = vmatpush.xpose.msra.mxu0 0.0
    %481 = vmatpush.xpose.msra.mxu0 %v464
    %482 = vmatmul.f32.gmra.mxu0 %v462
    %v483 = vpop.f32.mrf.mxu0
    %v484 = vadd.f32 0.0, %v483
    %485 = vdwg.mxu0
    %487 = vrot.lane.b32.xlu0 %v294, 120
    %v488 = vpop.permute.xlu0 %487
    %v489 = vsel %vm299, %v294, 0
    %v491 = vsel %vm299, %v488, 0
    %493 = vmatpush.xpose.msra.mxu0 0.0
    %494 = vmatpush.xpose.msra.mxu0 0.0
    %495 = vmatpush.xpose.msra.mxu0 0.0
    %496 = vmatpush.xpose.msra.mxu0 0.0
    %497 = vmatpush.xpose.msra.mxu0 0.0
    %498 = vmatpush.xpose.msra.mxu0 0.0
    %499 = vmatpush.xpose.msra.mxu0 0.0
    %500 = vmatpush.xpose.msra.mxu0 0.0
    %501 = vmatpush.xpose.msra.mxu0 0.0
    %502 = vmatpush.xpose.msra.mxu0 0.0
    %503 = vmatpush.xpose.msra.mxu0 0.0
    %504 = vmatpush.xpose.msra.mxu0 0.0
    %505 = vmatpush.xpose.msra.mxu0 0.0
    %506 = vmatpush.xpose.msra.mxu0 0.0
    %507 = vmatpush.xpose.msra.mxu0 0.0
    %508 = vmatpush.xpose.msra.mxu0 %v491
    %509 = vmatmul.f32.gmra.mxu0 %v489
    %v510 = vpop.f32.mrf.mxu0
    %v511 = vadd.f32 0.0, %v510
    %512 = vdwg.mxu0
    %v513 = vsel %vm299, %v322, -inf
    %514 = vmax.xlane.f32.xlu0 %v513
    %v515 = vpop.xlane.xlu0 %514
    %v516 = vsel %vm299, %v349, -inf
    %517 = vmax.xlane.f32.xlu0 %v516
    %v518 = vpop.xlane.xlu0 %517
    %v519 = vsel %vm299, %v376, -inf
    %520 = vmax.xlane.f32.xlu0 %v519
    %v521 = vpop.xlane.xlu0 %520
    %v522 = vsel %vm299, %v403, -inf
    %523 = vmax.xlane.f32.xlu0 %v522
    %v524 = vpop.xlane.xlu0 %523
    %v525 = vsel %vm299, %v430, -inf
    %526 = vmax.xlane.f32.xlu0 %v525
    %v527 = vpop.xlane.xlu0 %526
    %v528 = vsel %vm299, %v457, -inf
    %529 = vmax.xlane.f32.xlu0 %v528
    %v530 = vpop.xlane.xlu0 %529
    %v531 = vsel %vm299, %v484, -inf
    %532 = vmax.xlane.f32.xlu0 %v531
    %v533 = vpop.xlane.xlu0 %532
    %v534 = vsel %vm299, %v511, -inf
    %535 = vmax.xlane.f32.xlu0 %v534
    %v536 = vpop.xlane.xlu0 %535
    %v537 = vsub.f32 %v322, %v515
    %v538 = vsub.f32 %v349, %v518
    %v539 = vsub.f32 %v376, %v521
    %v540 = vsub.f32 %v403, %v524
    %v541 = vsub.f32 %v430, %v527
    %v542 = vsub.f32 %v457, %v530
    %v543 = vsub.f32 %v484, %v533
    %v544 = vsub.f32 %v511, %v536
    %v545 = vmul.f32 %v537, 1.442695
    %v546 = vpow.pop %v545
    %v547 = vmul.f32 %v538, 1.442695
    %v548 = vpow.pop %v547
    %v549 = vmul.f32 %v539, 1.442695
    %v550 = vpow.pop %v549
    %v551 = vmul.f32 %v540, 1.442695
    %v552 = vpow.pop %v551
    %v553 = vmul.f32 %v541, 1.442695
    %v554 = vpow.pop %v553
    %v555 = vmul.f32 %v542, 1.442695
    %v556 = vpow.pop %v555
    %v557 = vmul.f32 %v543, 1.442695
    %v558 = vpow.pop %v557
    %v559 = vmul.f32 %v544, 1.442695
    %v560 = vpow.pop %v559
    %v561 = vsel %vm299, %v546, 0.0
    %562 = vadd.xlane.f32.xlu0 %v561
    %v563 = vpop.xlane.xlu0 %562
    %v564 = vsel %vm299, %v548, 0.0
    %565 = vadd.xlane.f32.xlu0 %v564
    %v566 = vpop.xlane.xlu0 %565
    %v567 = vsel %vm299, %v550, 0.0
    %568 = vadd.xlane.f32.xlu0 %v567
    %v569 = vpop.xlane.xlu0 %568
    %v570 = vsel %vm299, %v552, 0.0
    %571 = vadd.xlane.f32.xlu0 %v570
    %v572 = vpop.xlane.xlu0 %571
    %v573 = vsel %vm299, %v554, 0.0
    %574 = vadd.xlane.f32.xlu0 %v573
    %v575 = vpop.xlane.xlu0 %574
    %v576 = vsel %vm299, %v556, 0.0
    %577 = vadd.xlane.f32.xlu0 %v576
    %v578 = vpop.xlane.xlu0 %577
    %v579 = vsel %vm299, %v558, 0.0
    %580 = vadd.xlane.f32.xlu0 %v579
    %v581 = vpop.xlane.xlu0 %580
    %v582 = vsel %vm299, %v560, 0.0
    %583 = vadd.xlane.f32.xlu0 %v582
    %v584 = vpop.xlane.xlu0 %583
    %v585 = vrcp.pop %v563
    %v586 = vmul.f32 %v563, %v585
    %v587 = vsub.f32 1.0, %v586
    %v588 = vmul.f32 %v585, %v587
    %v589 = vadd.f32 %v585, %v588
    %vm590 = vweird.f32 %v563
    %vm591 = vweird.f32 %v585
    %vm592 = vmor %vm590, %vm591
    %v593 = vsel %vm592, %v585, %v589
    %v594 = vand.u32 2147483647, %v563
    %vm595 = vcmp.eq.f32.partialorder %v594, 8.507059e+37
    %v596 = vand.u32 %v563, 2147483648
    %v597 = vor.u32 1.1754944e-38, %v596
    %v598 = vsel %vm595, %v597, %v593
    %v599 = vmul.f32 %v546, %v598
    %v600 = vrcp.pop %v566
    %v601 = vmul.f32 %v566, %v600
    %v602 = vsub.f32 1.0, %v601
    %v603 = vmul.f32 %v600, %v602
    %v604 = vadd.f32 %v600, %v603
    %vm605 = vweird.f32 %v566
    %vm606 = vweird.f32 %v600
    %vm607 = vmor %vm605, %vm606
    %v608 = vsel %vm607, %v600, %v604
    %v609 = vand.u32 2147483647, %v566
    %vm610 = vcmp.eq.f32.partialorder %v609, 8.507059e+37
    %v611 = vand.u32 %v566, 2147483648
    %v612 = vor.u32 1.1754944e-38, %v611
    %v613 = vsel %vm610, %v612, %v608
    %v614 = vmul.f32 %v548, %v613
    %v615 = vrcp.pop %v569
    %v616 = vmul.f32 %v569, %v615
    %v617 = vsub.f32 1.0, %v616
    %v618 = vmul.f32 %v615, %v617
    %v619 = vadd.f32 %v615, %v618
    %vm620 = vweird.f32 %v569
    %vm621 = vweird.f32 %v615
    %vm622 = vmor %vm620, %vm621
    %v623 = vsel %vm622, %v615, %v619
    %v624 = vand.u32 2147483647, %v569
    %vm625 = vcmp.eq.f32.partialorder %v624, 8.507059e+37
    %v626 = vand.u32 %v569, 2147483648
    %v627 = vor.u32 1.1754944e-38, %v626
    %v628 = vsel %vm625, %v627, %v623
    %v629 = vmul.f32 %v550, %v628
    %v630 = vrcp.pop %v572
    %v631 = vmul.f32 %v572, %v630
    %v632 = vsub.f32 1.0, %v631
    %v633 = vmul.f32 %v630, %v632
    %v634 = vadd.f32 %v630, %v633
    %vm635 = vweird.f32 %v572
    %vm636 = vweird.f32 %v630
    %vm637 = vmor %vm635, %vm636
    %v638 = vsel %vm637, %v630, %v634
    %v639 = vand.u32 2147483647, %v572
    %vm640 = vcmp.eq.f32.partialorder %v639, 8.507059e+37
    %v641 = vand.u32 %v572, 2147483648
    %v642 = vor.u32 1.1754944e-38, %v641
    %v643 = vsel %vm640, %v642, %v638
    %v644 = vmul.f32 %v552, %v643
    %v645 = vrcp.pop %v575
    %v646 = vmul.f32 %v575, %v645
    %v647 = vsub.f32 1.0, %v646
    %v648 = vmul.f32 %v645, %v647
    %v649 = vadd.f32 %v645, %v648
    %vm650 = vweird.f32 %v575
    %vm651 = vweird.f32 %v645
    %vm652 = vmor %vm650, %vm651
    %v653 = vsel %vm652, %v645, %v649
    %v654 = vand.u32 2147483647, %v575
    %vm655 = vcmp.eq.f32.partialorder %v654, 8.507059e+37
    %v656 = vand.u32 %v575, 2147483648
    %v657 = vor.u32 1.1754944e-38, %v656
    %v658 = vsel %vm655, %v657, %v653
    %v659 = vmul.f32 %v554, %v658
    %v660 = vrcp.pop %v578
    %v661 = vmul.f32 %v578, %v660
    %v662 = vsub.f32 1.0, %v661
    %v663 = vmul.f32 %v660, %v662
    %v664 = vadd.f32 %v660, %v663
    %vm665 = vweird.f32 %v578
    %vm666 = vweird.f32 %v660
    %vm667 = vmor %vm665, %vm666
    %v668 = vsel %vm667, %v660, %v664
    %v669 = vand.u32 2147483647, %v578
    %vm670 = vcmp.eq.f32.partialorder %v669, 8.507059e+37
    %v671 = vand.u32 %v578, 2147483648
    %v672 = vor.u32 1.1754944e-38, %v671
    %v673 = vsel %vm670, %v672, %v668
    %v674 = vmul.f32 %v556, %v673
    %v675 = vrcp.pop %v581
    %v676 = vmul.f32 %v581, %v675
    %v677 = vsub.f32 1.0, %v676
    %v678 = vmul.f32 %v675, %v677
    %v679 = vadd.f32 %v675, %v678
    %vm680 = vweird.f32 %v581
    %vm681 = vweird.f32 %v675
    %vm682 = vmor %vm680, %vm681
    %v683 = vsel %vm682, %v675, %v679
    %v684 = vand.u32 2147483647, %v581
    %vm685 = vcmp.eq.f32.partialorder %v684, 8.507059e+37
    %v686 = vand.u32 %v581, 2147483648
    %v687 = vor.u32 1.1754944e-38, %v686
    %v688 = vsel %vm685, %v687, %v683
    %v689 = vmul.f32 %v558, %v688
    %v690 = vrcp.pop %v584
    %v691 = vmul.f32 %v584, %v690
    %v692 = vsub.f32 1.0, %v691
    %v693 = vmul.f32 %v690, %v692
    %v694 = vadd.f32 %v690, %v693
    %vm695 = vweird.f32 %v584
    %vm696 = vweird.f32 %v690
    %vm697 = vmor %vm695, %vm696
    %v698 = vsel %vm697, %v690, %v694
    %v699 = vand.u32 2147483647, %v584
    %vm700 = vcmp.eq.f32.partialorder %v699, 8.507059e+37
    %v701 = vand.u32 %v584, 2147483648
    %v702 = vor.u32 1.1754944e-38, %v701
    %v703 = vsel %vm700, %v702, %v698
    %v704 = vmul.f32 %v560, %v703
    %705 = vrot.lane.b32.xlu0 %v151, 112
    %v706 = vpop.permute.xlu0 %705
    %v709 = vsel %vm299, %v599, 0
    %711 = vmatpush.msra.mxu0 0.0
    %712 = vmatpush.msra.mxu0 0.0
    %713 = vmatpush.msra.mxu0 0.0
    %714 = vmatpush.msra.mxu0 0.0
    %715 = vmatpush.msra.mxu0 0.0
    %716 = vmatpush.msra.mxu0 0.0
    %717 = vmatpush.msra.mxu0 0.0
    %718 = vmatpush.msra.mxu0 0.0
    %719 = vmatpush.msra.mxu0 0.0
    %720 = vmatpush.msra.mxu0 0.0
    %721 = vmatpush.msra.mxu0 0.0
    %722 = vmatpush.msra.mxu0 0.0
    %723 = vmatpush.msra.mxu0 0.0
    %724 = vmatpush.msra.mxu0 0.0
    %725 = vmatpush.msra.mxu0 0.0
    %726 = vmatpush.msra.mxu0 %v706
    %727 = vmatmul.f32.gmra.mxu0 %v709
    %v728 = vpop.f32.mrf.mxu0
    %v729 = vadd.f32 0.0, %v728
    %730 = vdwg.mxu0
    %731 = vrot.lane.b32.xlu0 %v174, 112
    %v732 = vpop.permute.xlu0 %731
    %v735 = vsel %vm299, %v614, 0
    %737 = vmatpush.msra.mxu0 0.0
    %738 = vmatpush.msra.mxu0 0.0
    %739 = vmatpush.msra.mxu0 0.0
    %740 = vmatpush.msra.mxu0 0.0
    %741 = vmatpush.msra.mxu0 0.0
    %742 = vmatpush.msra.mxu0 0.0
    %743 = vmatpush.msra.mxu0 0.0
    %744 = vmatpush.msra.mxu0 0.0
    %745 = vmatpush.msra.mxu0 0.0
    %746 = vmatpush.msra.mxu0 0.0
    %747 = vmatpush.msra.mxu0 0.0
    %748 = vmatpush.msra.mxu0 0.0
    %749 = vmatpush.msra.mxu0 0.0
    %750 = vmatpush.msra.mxu0 0.0
    %751 = vmatpush.msra.mxu0 0.0
    %752 = vmatpush.msra.mxu0 %v732
    %753 = vmatmul.f32.gmra.mxu0 %v735
    %v754 = vpop.f32.mrf.mxu0
    %v755 = vadd.f32 0.0, %v754
    %756 = vdwg.mxu0
    %757 = vrot.lane.b32.xlu0 %v194, 112
    %v758 = vpop.permute.xlu0 %757
    %v761 = vsel %vm299, %v629, 0
    %763 = vmatpush.msra.mxu0 0.0
    %764 = vmatpush.msra.mxu0 0.0
    %765 = vmatpush.msra.mxu0 0.0
    %766 = vmatpush.msra.mxu0 0.0
    %767 = vmatpush.msra.mxu0 0.0
    %768 = vmatpush.msra.mxu0 0.0
    %769 = vmatpush.msra.mxu0 0.0
    %770 = vmatpush.msra.mxu0 0.0
    %771 = vmatpush.msra.mxu0 0.0
    %772 = vmatpush.msra.mxu0 0.0
    %773 = vmatpush.msra.mxu0 0.0
    %774 = vmatpush.msra.mxu0 0.0
    %775 = vmatpush.msra.mxu0 0.0
    %776 = vmatpush.msra.mxu0 0.0
    %777 = vmatpush.msra.mxu0 0.0
    %778 = vmatpush.msra.mxu0 %v758
    %779 = vmatmul.f32.gmra.mxu0 %v761
    %v780 = vpop.f32.mrf.mxu0
    %v781 = vadd.f32 0.0, %v780
    %782 = vdwg.mxu0
    %783 = vrot.lane.b32.xlu0 %v214, 112
    %v784 = vpop.permute.xlu0 %783
    %v787 = vsel %vm299, %v644, 0
    %789 = vmatpush.msra.mxu0 0.0
    %790 = vmatpush.msra.mxu0 0.0
    %791 = vmatpush.msra.mxu0 0.0
    %792 = vmatpush.msra.mxu0 0.0
    %793 = vmatpush.msra.mxu0 0.0
    %794 = vmatpush.msra.mxu0 0.0
    %795 = vmatpush.msra.mxu0 0.0
    %796 = vmatpush.msra.mxu0 0.0
    %797 = vmatpush.msra.mxu0 0.0
    %798 = vmatpush.msra.mxu0 0.0
    %799 = vmatpush.msra.mxu0 0.0
    %800 = vmatpush.msra.mxu0 0.0
    %801 = vmatpush.msra.mxu0 0.0
    %802 = vmatpush.msra.mxu0 0.0
    %803 = vmatpush.msra.mxu0 0.0
    %804 = vmatpush.msra.mxu0 %v784
    %805 = vmatmul.f32.gmra.mxu0 %v787
    %v806 = vpop.f32.mrf.mxu0
    %v807 = vadd.f32 0.0, %v806
    %808 = vdwg.mxu0
    %809 = vrot.lane.b32.xlu0 %v234, 112
    %v810 = vpop.permute.xlu0 %809
    %v813 = vsel %vm299, %v659, 0
    %815 = vmatpush.msra.mxu0 0.0
    %816 = vmatpush.msra.mxu0 0.0
    %817 = vmatpush.msra.mxu0 0.0
    %818 = vmatpush.msra.mxu0 0.0
    %819 = vmatpush.msra.mxu0 0.0
    %820 = vmatpush.msra.mxu0 0.0
    %821 = vmatpush.msra.mxu0 0.0
    %822 = vmatpush.msra.mxu0 0.0
    %823 = vmatpush.msra.mxu0 0.0
    %824 = vmatpush.msra.mxu0 0.0
    %825 = vmatpush.msra.mxu0 0.0
    %826 = vmatpush.msra.mxu0 0.0
    %827 = vmatpush.msra.mxu0 0.0
    %828 = vmatpush.msra.mxu0 0.0
    %829 = vmatpush.msra.mxu0 0.0
    %830 = vmatpush.msra.mxu0 %v810
    %831 = vmatmul.f32.gmra.mxu0 %v813
    %v832 = vpop.f32.mrf.mxu0
    %v833 = vadd.f32 0.0, %v832
    %834 = vdwg.mxu0
    %835 = vrot.lane.b32.xlu0 %v254, 112
    %v836 = vpop.permute.xlu0 %835
    %v839 = vsel %vm299, %v674, 0
    %841 = vmatpush.msra.mxu0 0.0
    %842 = vmatpush.msra.mxu0 0.0
    %843 = vmatpush.msra.mxu0 0.0
    %844 = vmatpush.msra.mxu0 0.0
    %845 = vmatpush.msra.mxu0 0.0
    %846 = vmatpush.msra.mxu0 0.0
    %847 = vmatpush.msra.mxu0 0.0
    %848 = vmatpush.msra.mxu0 0.0
    %849 = vmatpush.msra.mxu0 0.0
    %850 = vmatpush.msra.mxu0 0.0
    %851 = vmatpush.msra.mxu0 0.0
    %852 = vmatpush.msra.mxu0 0.0
    %853 = vmatpush.msra.mxu0 0.0
    %854 = vmatpush.msra.mxu0 0.0
    %855 = vmatpush.msra.mxu0 0.0
    %856 = vmatpush.msra.mxu0 %v836
    %857 = vmatmul.f32.gmra.mxu0 %v839
    %v858 = vpop.f32.mrf.mxu0
    %v859 = vadd.f32 0.0, %v858
    %860 = vdwg.mxu0
    %861 = vrot.lane.b32.xlu0 %v274, 112
    %v862 = vpop.permute.xlu0 %861
    %v865 = vsel %vm299, %v689, 0
    %867 = vmatpush.msra.mxu0 0.0
    %868 = vmatpush.msra.mxu0 0.0
    %869 = vmatpush.msra.mxu0 0.0
    %870 = vmatpush.msra.mxu0 0.0
    %871 = vmatpush.msra.mxu0 0.0
    %872 = vmatpush.msra.mxu0 0.0
    %873 = vmatpush.msra.mxu0 0.0
    %874 = vmatpush.msra.mxu0 0.0
    %875 = vmatpush.msra.mxu0 0.0
    %876 = vmatpush.msra.mxu0 0.0
    %877 = vmatpush.msra.mxu0 0.0
    %878 = vmatpush.msra.mxu0 0.0
    %879 = vmatpush.msra.mxu0 0.0
    %880 = vmatpush.msra.mxu0 0.0
    %881 = vmatpush.msra.mxu0 0.0
    %882 = vmatpush.msra.mxu0 %v862
    %883 = vmatmul.f32.gmra.mxu0 %v865
    %v884 = vpop.f32.mrf.mxu0
    %v885 = vadd.f32 0.0, %v884
    %886 = vdwg.mxu0
    %887 = vrot.lane.b32.xlu0 %v294, 112
    %v888 = vpop.permute.xlu0 %887
    %v891 = vsel %vm299, %v704, 0
    %893 = vmatpush.msra.mxu0 0.0
    %894 = vmatpush.msra.mxu0 0.0
    %895 = vmatpush.msra.mxu0 0.0
    %896 = vmatpush.msra.mxu0 0.0
    %897 = vmatpush.msra.mxu0 0.0
    %898 = vmatpush.msra.mxu0 0.0
    %899 = vmatpush.msra.mxu0 0.0
    %900 = vmatpush.msra.mxu0 0.0
    %901 = vmatpush.msra.mxu0 0.0
    %902 = vmatpush.msra.mxu0 0.0
    %903 = vmatpush.msra.mxu0 0.0
    %904 = vmatpush.msra.mxu0 0.0
    %905 = vmatpush.msra.mxu0 0.0
    %906 = vmatpush.msra.mxu0 0.0
    %907 = vmatpush.msra.mxu0 0.0
    %908 = vmatpush.msra.mxu0 %v888
    %909 = vmatmul.f32.gmra.mxu0 %v891
    %v910 = vpop.f32.mrf.mxu0
    %v911 = vadd.f32 0.0, %v910
    %912 = vdwg.mxu0
    %917 = vrot.lane.b32.xlu0 %v106, 104
    %v918 = vpop.permute.xlu0 %917
    %919 = vrot.lane.b32.xlu0 %v107, 104
    %v920 = vpop.permute.xlu0 %919
    %921 = vrot.lane.b32.xlu0 %v108, 104
    %v922 = vpop.permute.xlu0 %921
    %923 = vrot.lane.b32.xlu0 %v109, 104
    %v924 = vpop.permute.xlu0 %923
    %v926 = vsel %vm299, %v729, 0
    %v928 = vsel %vm299, %v918, 0
    %v930 = vsel %vm299, %v920, 0
    %v932 = vsel %vm299, %v922, 0
    %v934 = vsel %vm299, %v924, 0
    %936 = vmatpush.xpose.msra.mxu0 0.0
    %937 = vmatpush.xpose.msra.mxu0 0.0
    %938 = vmatpush.xpose.msra.mxu0 0.0
    %939 = vmatpush.xpose.msra.mxu0 0.0
    %940 = vmatpush.xpose.msra.mxu0 0.0
    %941 = vmatpush.xpose.msra.mxu0 0.0
    %942 = vmatpush.xpose.msra.mxu0 0.0
    %943 = vmatpush.xpose.msra.mxu0 0.0
    %944 = vmatpush.xpose.msra.mxu0 0.0
    %945 = vmatpush.xpose.msra.mxu0 0.0
    %946 = vmatpush.xpose.msra.mxu0 0.0
    %947 = vmatpush.xpose.msra.mxu0 0.0
    %948 = vmatpush.xpose.msra.mxu0 %v934
    %949 = vmatpush.xpose.msra.mxu0 %v932
    %950 = vmatpush.xpose.msra.mxu0 %v930
    %951 = vmatpush.xpose.msra.mxu0 %v928
    %952 = vmatmul.f32.gmra.mxu0 %v926
    %v953 = vpop.f32.mrf.mxu0
    %v954 = vadd.f32 0.0, %v953
    %955 = vdwg.mxu0
    %v957 = vsel %vm299, %v755, 0
    %959 = vmatpush.xpose.msra.mxu0 0.0
    %960 = vmatpush.xpose.msra.mxu0 0.0
    %961 = vmatpush.xpose.msra.mxu0 0.0
    %962 = vmatpush.xpose.msra.mxu0 0.0
    %963 = vmatpush.xpose.msra.mxu0 0.0
    %964 = vmatpush.xpose.msra.mxu0 0.0
    %965 = vmatpush.xpose.msra.mxu0 0.0
    %966 = vmatpush.xpose.msra.mxu0 0.0
    %967 = vmatpush.xpose.msra.mxu0 0.0
    %968 = vmatpush.xpose.msra.mxu0 0.0
    %969 = vmatpush.xpose.msra.mxu0 0.0
    %970 = vmatpush.xpose.msra.mxu0 0.0
    %971 = vmatpush.xpose.msra.mxu0 %v934
    %972 = vmatpush.xpose.msra.mxu0 %v932
    %973 = vmatpush.xpose.msra.mxu0 %v930
    %974 = vmatpush.xpose.msra.mxu0 %v928
    %975 = vmatmul.f32.gmra.mxu0 %v957
    %v976 = vpop.f32.mrf.mxu0
    %v977 = vadd.f32 0.0, %v976
    %978 = vdwg.mxu0
    %983 = vrot.lane.b32.xlu0 %v110, 104
    %v984 = vpop.permute.xlu0 %983
    %985 = vrot.lane.b32.xlu0 %v111, 104
    %v986 = vpop.permute.xlu0 %985
    %987 = vrot.lane.b32.xlu0 %v112, 104
    %v988 = vpop.permute.xlu0 %987
    %989 = vrot.lane.b32.xlu0 %v113, 104
    %v990 = vpop.permute.xlu0 %989
    %v992 = vsel %vm299, %v781, 0
    %v994 = vsel %vm299, %v984, 0
    %v996 = vsel %vm299, %v986, 0
    %v998 = vsel %vm299, %v988, 0
    %v1000 = vsel %vm299, %v990, 0
    %1002 = vmatpush.xpose.msra.mxu0 0.0
    %1003 = vmatpush.xpose.msra.mxu0 0.0
    %1004 = vmatpush.xpose.msra.mxu0 0.0
    %1005 = vmatpush.xpose.msra.mxu0 0.0
    %1006 = vmatpush.xpose.msra.mxu0 0.0
    %1007 = vmatpush.xpose.msra.mxu0 0.0
    %1008 = vmatpush.xpose.msra.mxu0 0.0
    %1009 = vmatpush.xpose.msra.mxu0 0.0
    %1010 = vmatpush.xpose.msra.mxu0 0.0
    %1011 = vmatpush.xpose.msra.mxu0 0.0
    %1012 = vmatpush.xpose.msra.mxu0 0.0
    %1013 = vmatpush.xpose.msra.mxu0 0.0
    %1014 = vmatpush.xpose.msra.mxu0 %v1000
    %1015 = vmatpush.xpose.msra.mxu0 %v998
    %1016 = vmatpush.xpose.msra.mxu0 %v996
    %1017 = vmatpush.xpose.msra.mxu0 %v994
    %1018 = vmatmul.f32.gmra.mxu0 %v992
    %v1019 = vpop.f32.mrf.mxu0
    %v1020 = vadd.f32 0.0, %v1019
    %1021 = vdwg.mxu0
    %v1023 = vsel %vm299, %v807, 0
    %1025 = vmatpush.xpose.msra.mxu0 0.0
    %1026 = vmatpush.xpose.msra.mxu0 0.0
    %1027 = vmatpush.xpose.msra.mxu0 0.0
    %1028 = vmatpush.xpose.msra.mxu0 0.0
    %1029 = vmatpush.xpose.msra.mxu0 0.0
    %1030 = vmatpush.xpose.msra.mxu0 0.0
    %1031 = vmatpush.xpose.msra.mxu0 0.0
    %1032 = vmatpush.xpose.msra.mxu0 0.0
    %1033 = vmatpush.xpose.msra.mxu0 0.0
    %1034 = vmatpush.xpose.msra.mxu0 0.0
    %1035 = vmatpush.xpose.msra.mxu0 0.0
    %1036 = vmatpush.xpose.msra.mxu0 0.0
    %1037 = vmatpush.xpose.msra.mxu0 %v1000
    %1038 = vmatpush.xpose.msra.mxu0 %v998
    %1039 = vmatpush.xpose.msra.mxu0 %v996
    %1040 = vmatpush.xpose.msra.mxu0 %v994
    %1041 = vmatmul.f32.gmra.mxu0 %v1023
    %v1042 = vpop.f32.mrf.mxu0
    %v1043 = vadd.f32 0.0, %v1042
    %1044 = vdwg.mxu0
    %1049 = vrot.lane.b32.xlu0 %v114, 104
    %v1050 = vpop.permute.xlu0 %1049
    %1051 = vrot.lane.b32.xlu0 %v115, 104
    %v1052 = vpop.permute.xlu0 %1051
    %1053 = vrot.lane.b32.xlu0 %v116, 104
    %v1054 = vpop.permute.xlu0 %1053
    %1055 = vrot.lane.b32.xlu0 %v117, 104
    %v1056 = vpop.permute.xlu0 %1055
    %v1058 = vsel %vm299, %v833, 0
    %v1060 = vsel %vm299, %v1050, 0
    %v1062 = vsel %vm299, %v1052, 0
    %v1064 = vsel %vm299, %v1054, 0
    %v1066 = vsel %vm299, %v1056, 0
    %1068 = vmatpush.xpose.msra.mxu0 0.0
    %1069 = vmatpush.xpose.msra.mxu0 0.0
    %1070 = vmatpush.xpose.msra.mxu0 0.0
    %1071 = vmatpush.xpose.msra.mxu0 0.0
    %1072 = vmatpush.xpose.msra.mxu0 0.0
    %1073 = vmatpush.xpose.msra.mxu0 0.0
    %1074 = vmatpush.xpose.msra.mxu0 0.0
    %1075 = vmatpush.xpose.msra.mxu0 0.0
    %1076 = vmatpush.xpose.msra.mxu0 0.0
    %1077 = vmatpush.xpose.msra.mxu0 0.0
    %1078 = vmatpush.xpose.msra.mxu0 0.0
    %1079 = vmatpush.xpose.msra.mxu0 0.0
    %1080 = vmatpush.xpose.msra.mxu0 %v1066
    %1081 = vmatpush.xpose.msra.mxu0 %v1064
    %1082 = vmatpush.xpose.msra.mxu0 %v1062
    %1083 = vmatpush.xpose.msra.mxu0 %v1060
    %1084 = vmatmul.f32.gmra.mxu0 %v1058
    %v1085 = vpop.f32.mrf.mxu0
    %v1086 = vadd.f32 0.0, %v1085
    %1087 = vdwg.mxu0
    %v1089 = vsel %vm299, %v859, 0
    %1091 = vmatpush.xpose.msra.mxu0 0.0
    %1092 = vmatpush.xpose.msra.mxu0 0.0
    %1093 = vmatpush.xpose.msra.mxu0 0.0
    %1094 = vmatpush.xpose.msra.mxu0 0.0
    %1095 = vmatpush.xpose.msra.mxu0 0.0
    %1096 = vmatpush.xpose.msra.mxu0 0.0
    %1097 = vmatpush.xpose.msra.mxu0 0.0
    %1098 = vmatpush.xpose.msra.mxu0 0.0
    %1099 = vmatpush.xpose.msra.mxu0 0.0
    %1100 = vmatpush.xpose.msra.mxu0 0.0
    %1101 = vmatpush.xpose.msra.mxu0 0.0
    %1102 = vmatpush.xpose.msra.mxu0 0.0
    %1103 = vmatpush.xpose.msra.mxu0 %v1066
    %1104 = vmatpush.xpose.msra.mxu0 %v1064
    %1105 = vmatpush.xpose.msra.mxu0 %v1062
    %1106 = vmatpush.xpose.msra.mxu0 %v1060
    %1107 = vmatmul.f32.gmra.mxu0 %v1089
    %v1108 = vpop.f32.mrf.mxu0
    %v1109 = vadd.f32 0.0, %v1108
    %1110 = vdwg.mxu0
    %1115 = vrot.lane.b32.xlu0 %v118, 104
    %v1116 = vpop.permute.xlu0 %1115
    %1117 = vrot.lane.b32.xlu0 %v119, 104
    %v1118 = vpop.permute.xlu0 %1117
    %1119 = vrot.lane.b32.xlu0 %v120, 104
    %v1120 = vpop.permute.xlu0 %1119
    %1121 = vrot.lane.b32.xlu0 %v121, 104
    %v1122 = vpop.permute.xlu0 %1121
    %v1124 = vsel %vm299, %v885, 0
    %v1126 = vsel %vm299, %v1116, 0
    %v1128 = vsel %vm299, %v1118, 0
    %v1130 = vsel %vm299, %v1120, 0
    %v1132 = vsel %vm299, %v1122, 0
    %1134 = vmatpush.xpose.msra.mxu0 0.0
    %1135 = vmatpush.xpose.msra.mxu0 0.0
    %1136 = vmatpush.xpose.msra.mxu0 0.0
    %1137 = vmatpush.xpose.msra.mxu0 0.0
    %1138 = vmatpush.xpose.msra.mxu0 0.0
    %1139 = vmatpush.xpose.msra.mxu0 0.0
    %1140 = vmatpush.xpose.msra.mxu0 0.0
    %1141 = vmatpush.xpose.msra.mxu0 0.0
    %1142 = vmatpush.xpose.msra.mxu0 0.0
    %1143 = vmatpush.xpose.msra.mxu0 0.0
    %1144 = vmatpush.xpose.msra.mxu0 0.0
    %1145 = vmatpush.xpose.msra.mxu0 0.0
    %1146 = vmatpush.xpose.msra.mxu0 %v1132
    %1147 = vmatpush.xpose.msra.mxu0 %v1130
    %1148 = vmatpush.xpose.msra.mxu0 %v1128
    %1149 = vmatpush.xpose.msra.mxu0 %v1126
    %1150 = vmatmul.f32.gmra.mxu0 %v1124
    %v1151 = vpop.f32.mrf.mxu0
    %v1152 = vadd.f32 0.0, %v1151
    %1153 = vdwg.mxu0
    %v1155 = vsel %vm299, %v911, 0
    %1157 = vmatpush.xpose.msra.mxu0 0.0
    %1158 = vmatpush.xpose.msra.mxu0 0.0
    %1159 = vmatpush.xpose.msra.mxu0 0.0
    %1160 = vmatpush.xpose.msra.mxu0 0.0
    %1161 = vmatpush.xpose.msra.mxu0 0.0
    %1162 = vmatpush.xpose.msra.mxu0 0.0
    %1163 = vmatpush.xpose.msra.mxu0 0.0
    %1164 = vmatpush.xpose.msra.mxu0 0.0
    %1165 = vmatpush.xpose.msra.mxu0 0.0
    %1166 = vmatpush.xpose.msra.mxu0 0.0
    %1167 = vmatpush.xpose.msra.mxu0 0.0
    %1168 = vmatpush.xpose.msra.mxu0 0.0
    %1169 = vmatpush.xpose.msra.mxu0 %v1132
    %1170 = vmatpush.xpose.msra.mxu0 %v1130
    %1171 = vmatpush.xpose.msra.mxu0 %v1128
    %1172 = vmatpush.xpose.msra.mxu0 %v1126
    %1173 = vmatmul.f32.gmra.mxu0 %v1155
    %v1174 = vpop.f32.mrf.mxu0
    %v1175 = vadd.f32 0.0, %v1174
    %1176 = vdwg.mxu0
    %v1177 = vsel %vm48, %v954, 0.0
    %v1178 = vsel %vm48, %v1020, 0.0
    %v1179 = vadd.f32 %v1177, %v1178
    %v1180 = vsel %vm48, %v1086, 0.0
    %v1181 = vadd.f32 %v1179, %v1180
    %v1182 = vsel %vm48, %v1152, 0.0
    %v1183 = vadd.f32 %v1181, %v1182
    %v1184 = vsel %vm48, %v977, 0.0
    %v1185 = vsel %vm48, %v1043, 0.0
    %v1186 = vadd.f32 %v1184, %v1185
    %v1187 = vsel %vm48, %v1109, 0.0
    %v1188 = vadd.f32 %v1186, %v1187
    %v1189 = vsel %vm48, %v1175, 0.0
    %v1190 = vadd.f32 %v1188, %v1189
    %v1191 = vperm.slane %v47, 4
    %v1192 = vadd.f32 %v1183, %v1191
    %v1193 = vadd.f32 %v1190, %v1191
    %v1194 = vadd.f32 %v44, %v1192
    %v1195 = vadd.f32 %v45, %v1193
    %v1196 = vsel %vm48, %v1194, 0.0
    %1197 = vadd.xlane.f32.xlu0 %v1196
    %v1198 = vpop.xlane.xlu0 %1197
    %v1199 = vsel %vm48, %v1195, 0.0
    %1200 = vadd.xlane.f32.xlu0 %v1199
    %v1201 = vpop.xlane.xlu0 %1200
    %v1202 = vmul.f32 %v1198, %v61
    %v1203 = vmul.f32 %v1201, %v61
    %v1204 = vsub.f32 %v1194, %v1202
    %v1205 = vsub.f32 %v1195, %v1203
    %v1206 = vmul.f32 %v1204, %v1204
    %v1207 = vmul.f32 %v1205, %v1205
    %v1208 = vsel %vm48, %v1206, 0.0
    %1209 = vadd.xlane.f32.xlu0 %v1208
    %v1210 = vpop.xlane.xlu0 %1209
    %v1211 = vsel %vm48, %v1207, 0.0
    %1212 = vadd.xlane.f32.xlu0 %v1211
    %v1213 = vpop.xlane.xlu0 %1212
    %v1214 = vmul.f32 %v1210, %v61
    %v1215 = vmul.f32 %v1213, %v61
    %v1216 = vadd.f32 %v1214, 1e-05
    %v1217 = vadd.f32 %v1215, 1e-05
    %v1218 = vrsqrt.pop %v1216
    %v1219 = vmul.f32 %v1218, %v1216
    %v1220 = vmul.f32 %v1219, %v1218
    %v1221 = vmul.f32 0.5, %v1220
    %v1222 = vsub.f32 1.5, %v1221
    %v1223 = vmul.f32 %v1218, %v1222
    %vm1224 = vweird.f32 %v1216
    %vm1225 = vweird.f32 %v1218
    %vm1226 = vmor %vm1224, %vm1225
    %v1227 = vsel %vm1226, %v1218, %v1223
    %v1228 = vrsqrt.pop %v1217
    %v1229 = vmul.f32 %v1228, %v1217
    %v1230 = vmul.f32 %v1229, %v1228
    %v1231 = vmul.f32 0.5, %v1230
    %v1232 = vsub.f32 1.5, %v1231
    %v1233 = vmul.f32 %v1228, %v1232
    %vm1234 = vweird.f32 %v1217
    %vm1235 = vweird.f32 %v1228
    %vm1236 = vmor %vm1234, %vm1235
    %v1237 = vsel %vm1236, %v1228, %v1233
    %v1238 = vmul.f32 %v1204, %v1227
    %v1239 = vmul.f32 %v1205, %v1237
    %v1240 = vperm.slane %v47, 2
    %v1241 = vmul.f32 %v1238, %v1240
    %v1242 = vmul.f32 %v1239, %v1240
    %v1243 = vperm.slane %v47, 3
    %v1244 = vadd.f32 %v1241, %v1243
    %v1245 = vadd.f32 %v1242, %v1243
    %s1246 = scalar_lea.vmem [#allocation5], 160
    %v1247 = vld [vmem:[%s1246] sm:$0xff]
    %v1248 = vld [vmem:[%s1246 + $0x8] sm:$0xff]
    %v1249 = vld [vmem:[%s1246 + $0x10] sm:$0xff]
    %v1250 = vld [vmem:[%s1246 + $0x18] sm:$0xff]
    %v1251 = vld [vmem:[%s1246 + $0x20] sm:$0x1]
    %v1252 = vperm.slane %v1251, 0
    %v1254 = vsel %vm48, %v1244, 0
    %v1257 = vsel %vm48, %v1245, 0
    %1259 = vmatpush.msra.mxu0 0.0
    %1260 = vmatpush.msra.mxu0 0.0
    %1261 = vmatpush.msra.mxu0 0.0
    %1262 = vmatpush.msra.mxu0 0.0
    %1263 = vmatpush.msra.mxu0 0.0
    %1264 = vmatpush.msra.mxu0 0.0
    %1265 = vmatpush.msra.mxu0 0.0
    %1266 = vmatpush.msra.mxu0 0.0
    %1267 = vmatpush.msra.mxu0 0.0
    %1268 = vmatpush.msra.mxu0 0.0
    %1269 = vmatpush.msra.mxu0 0.0
    %1270 = vmatpush.msra.mxu0 0.0
    %1271 = vmatpush.msra.mxu0 %v1250
    %1272 = vmatpush.msra.mxu0 %v1249
    %1273 = vmatpush.msra.mxu0 %v1248
    %1274 = vmatpush.msra.mxu0 %v1247
    %1275 = vmatmul.f32.gmra.mxu0 %v1254
    %v1276 = vpop.f32.mrf.mxu0
    %v1277 = vadd.f32 %v1252, %v1276
    %1278 = vmatmul.f32.gmra.mxu0 %v1257
    %v1279 = vpop.f32.mrf.mxu0
    %v1280 = vadd.f32 %v1252, %v1279
    %1281 = vdwg.mxu0
    %v1282 = vmul.f32 %v1277, 0.5
    %v1283 = vmul.f32 %v1280, 0.5
    %v1284 = vrcp.pop 1.4142135
    %v1285 = vmul.f32 1.4142135, %v1284
    %v1286 = vsub.f32 1.0, %v1285
    %v1287 = vmul.f32 %v1284, %v1286
    %v1288 = vadd.f32 %v1284, %v1287
    %vm1289 = vweird.f32 %v1284
    %v1290 = vsel %vm1289, %v1284, %v1288
    %v1291 = vmul.f32 %v1277, %v1290
    %v1292 = vmul.f32 %v1280, %v1290
    %v1293 = vmul.f32 %v1291, %v1291
    %v1294 = vmin.f32 16.0, %v1293
    %v1295 = vmul.f32 %v1294, 2.1237322e-06
    %v1296 = vadd.f32 %v1295, 0.00028619796
    %v1297 = vmul.f32 %v1294, %v1296
    %v1298 = vadd.f32 %v1297, 0.0036580483
    %v1299 = vmul.f32 %v1294, %v1298
    %v1300 = vadd.f32 %v1299, 0.05243302
    %v1301 = vmul.f32 %v1294, %v1300
    %v1302 = vadd.f32 %v1301, 0.18741608
    %v1303 = vmul.f32 %v1294, %v1302
    %v1304 = vadd.f32 %v1303, 1.1283791
    %v1305 = vmul.f32 %v1291, %v1304
    %v1306 = vmul.f32 %v1294, 3.8918573e-05
    %v1307 = vadd.f32 %v1306, 0.001143296
    %v1308 = vmul.f32 %v1294, %v1307
    %v1309 = vadd.f32 %v1308, 0.014752088
    %v1310 = vmul.f32 %v1294, %v1309
    %v1311 = vadd.f32 %v1310, 0.112945676
    %v1312 = vmul.f32 %v1294, %v1311
    %v1313 = vadd.f32 %v1312, 0.4994258
    %v1314 = vmul.f32 %v1294, %v1313
    %v1315 = vadd.f32 %v1314, 1.0
    %v1316 = vrcp.pop %v1315
    %v1317 = vmul.f32 %v1315, %v1316
    %v1318 = vsub.f32 1.0, %v1317
    %v1319 = vmul.f32 %v1316, %v1318
    %v1320 = vadd.f32 %v1316, %v1319
    %vm1321 = vweird.f32 %v1315
    %vm1322 = vweird.f32 %v1316
    %vm1323 = vmor %vm1321, %vm1322
    %v1324 = vsel %vm1323, %v1316, %v1320
    %v1325 = vand.u32 2147483647, %v1315
    %vm1326 = vcmp.eq.f32.partialorder %v1325, 8.507059e+37
    %v1327 = vand.u32 %v1315, 2147483648
    %v1328 = vor.u32 1.1754944e-38, %v1327
    %v1329 = vsel %vm1326, %v1328, %v1324
    %v1330 = vmul.f32 %v1305, %v1329
    %v1331 = vmin.f32 %v1330, 1.0
    %v1332 = vmax.f32 %v1331, -1.0
    %v1333 = vmul.f32 %v1292, %v1292
    %v1334 = vmin.f32 16.0, %v1333
    %v1335 = vmul.f32 %v1334, 2.1237322e-06
    %v1336 = vadd.f32 %v1335, 0.00028619796
    %v1337 = vmul.f32 %v1334, %v1336
    %v1338 = vadd.f32 %v1337, 0.0036580483
    %v1339 = vmul.f32 %v1334, %v1338
    %v1340 = vadd.f32 %v1339, 0.05243302
    %v1341 = vmul.f32 %v1334, %v1340
    %v1342 = vadd.f32 %v1341, 0.18741608
    %v1343 = vmul.f32 %v1334, %v1342
    %v1344 = vadd.f32 %v1343, 1.1283791
    %v1345 = vmul.f32 %v1292, %v1344
    %v1346 = vmul.f32 %v1334, 3.8918573e-05
    %v1347 = vadd.f32 %v1346, 0.001143296
    %v1348 = vmul.f32 %v1334, %v1347
    %v1349 = vadd.f32 %v1348, 0.014752088
    %v1350 = vmul.f32 %v1334, %v1349
    %v1351 = vadd.f32 %v1350, 0.112945676
    %v1352 = vmul.f32 %v1334, %v1351
    %v1353 = vadd.f32 %v1352, 0.4994258
    %v1354 = vmul.f32 %v1334, %v1353
    %v1355 = vadd.f32 %v1354, 1.0
    %v1356 = vrcp.pop %v1355
    %v1357 = vmul.f32 %v1355, %v1356
    %v1358 = vsub.f32 1.0, %v1357
    %v1359 = vmul.f32 %v1356, %v1358
    %v1360 = vadd.f32 %v1356, %v1359
    %vm1361 = vweird.f32 %v1355
    %vm1362 = vweird.f32 %v1356
    %vm1363 = vmor %vm1361, %vm1362
    %v1364 = vsel %vm1363, %v1356, %v1360
    %v1365 = vand.u32 2147483647, %v1355
    %vm1366 = vcmp.eq.f32.partialorder %v1365, 8.507059e+37
    %v1367 = vand.u32 %v1355, 2147483648
    %v1368 = vor.u32 1.1754944e-38, %v1367
    %v1369 = vsel %vm1366, %v1368, %v1364
    %v1370 = vmul.f32 %v1345, %v1369
    %v1371 = vmin.f32 %v1370, 1.0
    %v1372 = vmax.f32 %v1371, -1.0
    %v1373 = vadd.f32 %v1332, 1.0
    %v1374 = vadd.f32 %v1372, 1.0
    %v1375 = vmul.f32 %v1282, %v1373
    %v1376 = vmul.f32 %v1283, %v1374
    %s1377 = scalar_lea.vmem [#allocation5], 200
    %v1378 = vld [vmem:[%s1377] sm:$0xff]
    %v1379 = vld [vmem:[%s1377 + $0x8] sm:$0xff]
    %v1380 = vld [vmem:[%s1377 + $0x10] sm:$0xff]
    %v1381 = vld [vmem:[%s1377 + $0x18] sm:$0xff]
    %v1382 = vld [vmem:[%s1377 + $0x20] sm:$0x1]
    %v1383 = vperm.slane %v1382, 0
    %1384 = vmatpush.xpose.msra.mxu0 0.0
    %1385 = vmatpush.xpose.msra.mxu0 0.0
    %1386 = vmatpush.xpose.msra.mxu0 0.0
    %1387 = vmatpush.xpose.msra.mxu0 0.0
    %1388 = vmatpush.xpose.msra.mxu0 0.0
    %1389 = vmatpush.xpose.msra.mxu0 0.0
    %1390 = vmatpush.xpose.msra.mxu0 0.0
    %1391 = vmatpush.xpose.msra.mxu0 0.0
    %1392 = vmatpush.xpose.msra.mxu0 0.0
    %1393 = vmatpush.xpose.msra.mxu0 0.0
    %1394 = vmatpush.xpose.msra.mxu0 0.0
    %1395 = vmatpush.xpose.msra.mxu0 0.0
    %1396 = vmatpush.xpose.msra.mxu0 %v1381
    %1397 = vmatpush.xpose.msra.mxu0 %v1380
    %1398 = vmatpush.xpose.msra.mxu0 %v1379
    %1399 = vmatpush.xpose.msra.mxu0 %v1378
    %1400 = vmatmul.f32.gmra.mxu0 %v1375
    %v1401 = vpop.f32.mrf.mxu0
    %v1402 = vadd.f32 %v1383, %v1401
    %1403 = vmatmul.f32.gmra.mxu0 %v1376
    %v1404 = vpop.f32.mrf.mxu0
    %v1405 = vadd.f32 %v1383, %v1404
    %1406 = vdwg.mxu0
    %v1407 = vadd.f32 %v1194, %v1402
    %v1408 = vadd.f32 %v1195, %v1405
    %1409 = vst.msk [vmem:[#allocation7] sm:$0xff] %vm48, %v1407
    %1410 = vst.msk [vmem:[#allocation7 + $0x8] sm:$0xff] %vm48, %v1408
    // Predicated region
    $region18: #{tpu_custom_call.1} parent=1 // pred_check
      _
    $region19: #{tpu_custom_call.1} parent=1 // pred_check_branch
      %1412 = sbr.rel (0) target = $region21
    $region20: #{tpu_custom_call.1} parent=1 // pred_region
      %1414 = vsyncadd [#allocation4], 0
      %s1415 = sshll.u32 [#allocation7], 4
      %s1416 = int_to_ptr.vmem [resolvable:$true] %s1415
      %s1417 = sshll.u32 %s2, 4
      %s1418 = int_to_ptr.hbm [resolvable:$true] %s1417
      %1423 = dma.vmem_to_hbm [thread:$0]  %s1416, 256, %s1418, [#allocation4], 128, 128, 8
    $region21: #{tpu_custom_call.1} parent=1 // pred_fallthru
      _
    // Predicated region
    $region22: #{tpu_custom_call.1} parent=1 // pred_check
      _
    $region23: #{tpu_custom_call.1} parent=1 // pred_check_branch
      %1425 = sbr.rel (0) target = $region25
    $region24: #{tpu_custom_call.1} parent=1 // pred_region
      %1427 = dma.done [#allocation4], 256
    $region25: #{tpu_custom_call.1} parent=1 // pred_fallthru
      _
    %1428 = vsyncpa [#allocation3], 1
    %1429 = vsyncpa [#allocation6], 1
    %1430 = vsyncpa [#allocation4], 1

</llo_original>
